<compile_context>
chip_gen: v6e
topology: v6e:2x2x1
jax: 0.10.0
libtpu: 0.0.40
codegen_flags: <defaults>
</compile_context>

<pallas_src>
import jax
import jax.numpy as jnp
from jax.experimental import pallas as pl
from jax.experimental.pallas import tpu as pltpu

# Small, module-consistent shapes.
N = 16        # number of graph nodes
F_IN = 8      # in_feats
H = 32        # hidden_feats
EH = 32       # edge_hidden_feats
E = 32        # number of edges
EDGE_DIM = 1  # edge_dim defaults to 1 in the module
HH = H * H

GD_ROWS, GD_COLS = N + E, E + F_IN          # gdata  [48, 40]
WS_ROWS, WS_COLS = 48, 7 * H                # wsmall [48, 224]
WB_ROWS, WB_COLS = 72, HH                   # wbig   [72, 1024]
OUT_LANES = 4 * H                           # lane-dense output width (128)


def _vmem():
    return pl.BlockSpec(memory_space=pltpu.MemorySpace.VMEM)


# --------------------------- fused forward kernel ---------------------------
def fused_mpnn_kernel(gdata_ref, wsmall_ref, wbig_ref, o_ref):
    f32 = jnp.float32

    # One full load per operand; everything below is static slicing of
    # VMEM-resident values (no reloads, no relayout-heavy reshapes).
    g = gdata_ref[...]        # [48, 40]
    ws = wsmall_ref[...]      # [48, 224]
    wb = wbig_ref[...]        # [72, 1024]

    # ---- unpack graph data --------------------------------------------------
    dst_oh = g[0:N, 0:E]                  # [N, E]  scatter one-hot
    x      = g[0:N, E:E + F_IN]           # [N, F_IN]
    src_oh = g[N:N + E, 0:N]              # [E, N]  gather one-hot
    ea     = g[N:N + E, N:N + 1]          # [E, 1]

    # ---- unpack weights -----------------------------------------------------
    wh  = ws[0:H, 0:4 * H]                # [H, 4H]  root | whr | whz | whn
    wi  = ws[0:H, 4 * H:7 * H]            # [H, 3H]  wir | wiz | win
    bh  = ws[H:H + 1, 0:4 * H]            # [1, 4H]
    bi  = ws[H:H + 1, 4 * H:7 * H]        # [1, 3H]
    we1 = ws[H + 1:H + 2, 0:EH]           # [1, EH]
    b0  = ws[H + 1:H + 2, EH:EH + H]      # [1, H]
    be1 = ws[H + 1:H + 2, EH + H:EH + 2 * H]  # [1, EH]
    w0  = ws[40:48, 0:H]                  # [F_IN, H]

    we2 = wb[0:EH, :]                     # [EH, H*H]
    rep = wb[EH:EH + H, :]                # [H, H*H]  precomputed repeat matrix
    be2 = wb[EH + H:EH + H + 1, :]        # [1, H*H]

    # ---- embed_0: Linear(F_IN, H) + ReLU.  x0 is also the GRU hidden h0. ----
    x0 = jnp.dot(x, w0, preferred_element_type=f32)
    x0 = jnp.maximum(x0 + b0, 0.0)                                   # [N, H]

    # ---- edge network: Linear(1, EH) -> ReLU -> Linear(EH, H*H) -------------
    h1 = jnp.maximum(ea * we1 + be1, 0.0)                            # [E, EH]
    ew = jnp.dot(h1, we2, preferred_element_type=f32) + be2          # [E, H*H]

    # ---- NNConv (aggr='add'): gather -> per-edge matmul -> scatter-add ------
    x_src = jnp.dot(src_oh, x0, preferred_element_type=f32)          # [E, H]
    # x_rep[e, i*H + o] = x_src[e, i]  via precomputed one-hot repeat matrix.
    x_rep = jnp.dot(x_src, rep, preferred_element_type=f32)          # [E, H*H]
    prod = x_rep * ew                                                # [E, H*H]

    # Group-sum m[e, o] = sum_i prod[e, i*H + o] without a [1024, H] matmul:
    # fold the eight 128-lane vregs with adds, then fold the remaining four
    # 32-lane groups with two XLU rolls.
    acc = (prod[:, 0:128] + prod[:, 128:256]
           + prod[:, 256:384] + prod[:, 384:512]
           + prod[:, 512:640] + prod[:, 640:768]
           + prod[:, 768:896] + prod[:, 896:1024])                   # [E, 128]
    acc = acc + pltpu.roll(acc, shift=H, axis=1)
    acc = acc + pltpu.roll(acc, shift=2 * H, axis=1)
    m = acc[:, 0:H]                                                  # [E, H]

    # Scatter-add into destination nodes via one-hot matmul.
    agg = jnp.dot(dst_oh, m, preferred_element_type=f32)             # [N, H]

    # ---- x0-side matmul: [root | whr | whz | whn], one 128-lane MXU push ----
    hm = jnp.dot(x0, wh, preferred_element_type=f32) + bh            # [N, 4H]
    x1 = agg + hm[:, 0:H]                # NNConv output (root + bias folded in)
    hr = hm[:, H:2 * H]
    hz = hm[:, 2 * H:3 * H]
    hn = hm[:, 3 * H:4 * H]

    # ---- GRU input-side matmul: [wir | wiz | win] ----------------------------
    im = jnp.dot(x1, wi, preferred_element_type=f32) + bi            # [N, 3H]
    r = jax.nn.sigmoid(im[:, 0:H] + hr)
    z = jax.nn.sigmoid(im[:, H:2 * H] + hz)
    n = jnp.tanh(im[:, 2 * H:3 * H] + r * hn)

    out = (1.0 - z) * n + z * x0                                     # [N, H]
    # Lane-dense (128-lane) store: result in lanes 0:H, already-computed `im`
    # fills the rest (never observed; wrapper slices [:, :H]).
    o_ref[...] = jnp.concatenate([out, im], axis=1)


# ------------------------------- packing -------------------------------------
def pack_params(params):
    """Concatenate weights/biases into 2 slabs so the kernel does 2 big DMAs."""
    f32 = jnp.float32
    wh = jnp.concatenate(
        [params['root'], params['whr'], params['whz'], params['whn']], axis=1)   # [H, 4H]
    wi = jnp.concatenate([params['wir'], params['wiz'], params['win']], axis=1)  # [H, 3H]
    bh = jnp.concatenate(
        [params['bias'], params['bhr'], params['bhz'], params['bhn']], axis=1)   # [1, 4H]
    bi = jnp.concatenate([params['bir'], params['biz'], params['bin']], axis=1)  # [1, 3H]

    wsmall = jnp.zeros((WS_ROWS, WS_COLS), f32)
    wsmall = wsmall.at[0:H, 0:7 * H].set(jnp.concatenate([wh, wi], axis=1))
    wsmall = wsmall.at[H, 0:7 * H].set(jnp.concatenate([bh, bi], axis=1)[0])
    wsmall = wsmall.at[H + 1, 0:EH].set(params['we1'][0])
    wsmall = wsmall.at[H + 1, EH:EH + H].set(params['b0'][0])
    wsmall = wsmall.at[H + 1, EH + H:EH + 2 * H].set(params['be1'][0])
    wsmall = wsmall.at[40:48, 0:H].set(params['w0'])

    # Repeat matrix R[i, k] = 1 iff k // H == i  (x_rep = x_src @ R).
    ii = jnp.arange(H, dtype=jnp.int32)[:, None]
    kk = jnp.arange(HH, dtype=jnp.int32)[None, :]
    rep = (kk // H == ii).astype(f32)                                 # [H, H*H]

    wbig = jnp.zeros((WB_ROWS, WB_COLS), f32)
    wbig = wbig.at[0:EH, :].set(params['we2'])
    wbig = wbig.at[EH:EH + H, :].set(rep)
    wbig = wbig.at[EH + H, :].set(params['be2'][0])
    return wsmall, wbig


def pack_inputs(x, edge_index, edge_attr):
    """Pack node features, one-hot gather/scatter matrices and edge_attr into
    one operand (one DMA)."""
    f32 = jnp.float32
    src = edge_index[0].astype(jnp.int32)
    dst = edge_index[1].astype(jnp.int32)
    node_ids = jnp.arange(N, dtype=jnp.int32)
    src_oh = (src[:, None] == node_ids[None, :]).astype(f32)          # [E, N]
    dst_oh = (node_ids[:, None] == dst[None, :]).astype(f32)          # [N, E]

    gdata = jnp.zeros((GD_ROWS, GD_COLS), f32)
    gdata = gdata.at[0:N, 0:E].set(dst_oh)
    gdata = gdata.at[0:N, E:E + F_IN].set(x)
    gdata = gdata.at[N:N + E, 0:N].set(src_oh)
    gdata = gdata.at[N:N + E, N].set(edge_attr[:, 0])
    return gdata


# ------------------------------- wrapper -------------------------------------
def message_passing_forward(wsmall, wbig, x, edge_index, edge_attr):
    gdata = pack_inputs(x, edge_index, edge_attr)
    out = pl.pallas_call(
        fused_mpnn_kernel,
        out_shape=jax.ShapeDtypeStruct((N, OUT_LANES), jnp.float32),
        in_specs=[_vmem(), _vmem(), _vmem()],
        out_specs=_vmem(),
    )(gdata, wsmall, wbig)
    return out[:, :H]


# ------------------------- pure-JAX reference --------------------------------
def reference_forward(params, x, edge_index, edge_attr):
    src = edge_index[0]
    dst = edge_index[1]
    x0 = jax.nn.relu(x @ params['w0'] + params['b0'])
    h0 = x0
    e1 = jax.nn.relu(edge_attr @ params['we1'] + params['be1'])
    ew = e1 @ params['we2'] + params['be2']
    w3 = ew.reshape(E, H, H)
    x_src = x0[src]
    m = jnp.einsum('ei,eio->eo', x_src, w3)
    agg = jnp.zeros((N, H), jnp.float32).at[dst].add(m)
    x1 = agg + x0 @ params['root'] + params['bias']
    r = jax.nn.sigmoid(x1 @ params['wir'] + params['bir'] + h0 @ params['whr'] + params['bhr'])
    z = jax.nn.sigmoid(x1 @ params['wiz'] + params['biz'] + h0 @ params['whz'] + params['bhz'])
    n = jnp.tanh(x1 @ params['win'] + params['bin'] + r * (h0 @ params['whn'] + params['bhn']))
    return (1.0 - z) * n + z * h0


def init_params(key):
    def uinit(k, shape, fan_in):
        bound = 1.0 / jnp.sqrt(jnp.float32(fan_in))
        return jax.random.uniform(k, shape, jnp.float32, -bound, bound)

    ks = jax.random.split(key, 24)
    p = {
        # embed_0: Linear(F_IN, H)
        'w0': uinit(ks[0], (F_IN, H), F_IN), 'b0': uinit(ks[1], (1, H), F_IN),
        # edge network: Linear(1, EH) -> ReLU -> Linear(EH, H*H)
        'we1': uinit(ks[2], (EDGE_DIM, EH), EDGE_DIM), 'be1': uinit(ks[3], (1, EH), EDGE_DIM),
        'we2': uinit(ks[4], (EH, H * H), EH), 'be2': uinit(ks[5], (1, H * H), EH),
        # NNConv root weight + bias
        'root': uinit(ks[6], (H, H), H), 'bias': uinit(ks[7], (1, H), H),
        # GRU(H, H) split into per-gate [H, H] weights (already transposed to [in, out])
        'wir': uinit(ks[8], (H, H), H), 'wiz': uinit(ks[9], (H, H), H),
        'win': uinit(ks[10], (H, H), H),
        'whr': uinit(ks[11], (H, H), H), 'whz': uinit(ks[12], (H, H), H),
        'whn': uinit(ks[13], (H, H), H),
        'bir': uinit(ks[14], (1, H), H), 'biz': uinit(ks[15], (1, H), H),
        'bin': uinit(ks[16], (1, H), H),
        'bhr': uinit(ks[17], (1, H), H), 'bhz': uinit(ks[18], (1, H), H),
        'bhn': uinit(ks[19], (1, H), H),
    }
    return p


if __name__ == "__main__":
    key = jax.random.PRNGKey(0)
    kp, kx, ke, ka = jax.random.split(key, 4)

    params = init_params(kp)
    x = jax.random.normal(kx, (N, F_IN), jnp.float32)
    edge_index = jax.random.randint(ke, (2, E), 0, N, jnp.int32)
    edge_attr = jax.random.normal(ka, (E, EDGE_DIM), jnp.float32)

    wsmall, wbig = pack_params(params)   # weight packing done once, off the hot path
    fwd = jax.jit(message_passing_forward)
    out = fwd(wsmall, wbig, x, edge_index, edge_attr)
    out = jax.block_until_ready(out)

    ref = reference_forward(params, x, edge_index, edge_attr)
    assert out.shape == (N, H)
    assert jnp.allclose(out, ref, rtol=1e-3, atol=1e-3), float(jnp.max(jnp.abs(out - ref)))

    print("KERNEL_OK")
</pallas_src>

<mosaic_0001>
module attributes {stable_mosaic.version = 11 : i64} {
  func.func @fused_mpnn_kernel(%arg0: memref<48x40xf32, #tpu.memory_space<vmem>>, %arg1: memref<48x224xf32, #tpu.memory_space<vmem>>, %arg2: memref<72x1024xf32, #tpu.memory_space<vmem>>, %arg3: memref<16x128xf32, #tpu.memory_space<vmem>>) attributes {dimension_semantics = [], scalar_prefetch = 0 : i64, scratch_operands = 0 : i64, tpu.core_type = #tpu.core_type<tc>} {
    %c0 = arith.constant 0 : index
    %c0_0 = arith.constant 0 : index
    %0 = vector.load %arg0[%c0, %c0_0] : memref<48x40xf32, #tpu.memory_space<vmem>>, vector<48x40xf32>
    %c0_1 = arith.constant 0 : index
    %c0_2 = arith.constant 0 : index
    %1 = vector.load %arg1[%c0_1, %c0_2] : memref<48x224xf32, #tpu.memory_space<vmem>>, vector<48x224xf32>
    %c0_3 = arith.constant 0 : index
    %c0_4 = arith.constant 0 : index
    %2 = vector.load %arg2[%c0_3, %c0_4] : memref<72x1024xf32, #tpu.memory_space<vmem>>, vector<72x1024xf32>
    %3 = vector.extract_strided_slice %0 {offsets = [0, 0], sizes = [16, 32], strides = [1, 1]} : vector<48x40xf32> to vector<16x32xf32>
    %4 = vector.extract_strided_slice %0 {offsets = [0, 32], sizes = [16, 8], strides = [1, 1]} : vector<48x40xf32> to vector<16x8xf32>
    %5 = vector.extract_strided_slice %0 {offsets = [16, 0], sizes = [32, 16], strides = [1, 1]} : vector<48x40xf32> to vector<32x16xf32>
    %6 = vector.extract_strided_slice %0 {offsets = [16, 16], sizes = [32, 1], strides = [1, 1]} : vector<48x40xf32> to vector<32x1xf32>
    %7 = vector.extract_strided_slice %1 {offsets = [0, 0], sizes = [32, 128], strides = [1, 1]} : vector<48x224xf32> to vector<32x128xf32>
    %8 = vector.extract_strided_slice %1 {offsets = [0, 128], sizes = [32, 96], strides = [1, 1]} : vector<48x224xf32> to vector<32x96xf32>
    %9 = vector.extract_strided_slice %1 {offsets = [32, 0], sizes = [1, 128], strides = [1, 1]} : vector<48x224xf32> to vector<1x128xf32>
    %10 = vector.extract_strided_slice %1 {offsets = [32, 128], sizes = [1, 96], strides = [1, 1]} : vector<48x224xf32> to vector<1x96xf32>
    %11 = vector.extract_strided_slice %1 {offsets = [33, 0], sizes = [1, 32], strides = [1, 1]} : vector<48x224xf32> to vector<1x32xf32>
    %12 = vector.extract_strided_slice %1 {offsets = [33, 32], sizes = [1, 32], strides = [1, 1]} : vector<48x224xf32> to vector<1x32xf32>
    %13 = vector.extract_strided_slice %1 {offsets = [33, 64], sizes = [1, 32], strides = [1, 1]} : vector<48x224xf32> to vector<1x32xf32>
    %14 = vector.extract_strided_slice %1 {offsets = [40, 0], sizes = [8, 32], strides = [1, 1]} : vector<48x224xf32> to vector<8x32xf32>
    %15 = vector.extract_strided_slice %2 {offsets = [0, 0], sizes = [32, 1024], strides = [1, 1]} : vector<72x1024xf32> to vector<32x1024xf32>
    %16 = vector.extract_strided_slice %2 {offsets = [32, 0], sizes = [32, 1024], strides = [1, 1]} : vector<72x1024xf32> to vector<32x1024xf32>
    %17 = vector.extract_strided_slice %2 {offsets = [64, 0], sizes = [1, 1024], strides = [1, 1]} : vector<72x1024xf32> to vector<1x1024xf32>
    %cst = arith.constant dense<0.000000e+00> : vector<16x32xf32>
    %18 = tpu.matmul %4, %14, %cst {dimension_numbers = #tpu.dot_dimension_numbers<[1], [0], [0], [1], [0, 0, 1, 1], [], []>} : vector<16x8xf32>, vector<8x32xf32>, vector<16x32xf32> -> vector<16x32xf32>
    %19 = vector.broadcast %12 : vector<1x32xf32> to vector<16x32xf32>
    %20 = arith.addf %18, %19 : vector<16x32xf32>
    %cst_5 = arith.constant 0.000000e+00 : f32
    %21 = vector.broadcast %cst_5 : f32 to vector<16x32xf32>
    %22 = arith.maximumf %20, %21 : vector<16x32xf32>
    %23 = vector.broadcast %6 : vector<32x1xf32> to vector<32x32xf32>
    %24 = vector.broadcast %11 : vector<1x32xf32> to vector<32x32xf32>
    %25 = arith.mulf %23, %24 : vector<32x32xf32>
    %26 = vector.broadcast %13 : vector<1x32xf32> to vector<32x32xf32>
    %27 = arith.addf %25, %26 : vector<32x32xf32>
    %cst_6 = arith.constant 0.000000e+00 : f32
    %28 = vector.broadcast %cst_6 : f32 to vector<32x32xf32>
    %29 = arith.maximumf %27, %28 : vector<32x32xf32>
    %cst_7 = arith.constant dense<0.000000e+00> : vector<32x1024xf32>
    %30 = tpu.matmul %29, %15, %cst_7 {dimension_numbers = #tpu.dot_dimension_numbers<[1], [0], [0], [1], [0, 0, 1, 1], [], []>} : vector<32x32xf32>, vector<32x1024xf32>, vector<32x1024xf32> -> vector<32x1024xf32>
    %31 = vector.broadcast %17 : vector<1x1024xf32> to vector<32x1024xf32>
    %32 = arith.addf %30, %31 : vector<32x1024xf32>
    %cst_8 = arith.constant dense<0.000000e+00> : vector<32x32xf32>
    %33 = tpu.matmul %5, %22, %cst_8 {dimension_numbers = #tpu.dot_dimension_numbers<[1], [0], [0], [1], [0, 0, 1, 1], [], []>} : vector<32x16xf32>, vector<16x32xf32>, vector<32x32xf32> -> vector<32x32xf32>
    %cst_9 = arith.constant dense<0.000000e+00> : vector<32x1024xf32>
    %34 = tpu.matmul %33, %16, %cst_9 {dimension_numbers = #tpu.dot_dimension_numbers<[1], [0], [0], [1], [0, 0, 1, 1], [], []>} : vector<32x32xf32>, vector<32x1024xf32>, vector<32x1024xf32> -> vector<32x1024xf32>
    %35 = arith.mulf %34, %32 : vector<32x1024xf32>
    %36 = vector.extract_strided_slice %35 {offsets = [0, 0], sizes = [32, 128], strides = [1, 1]} : vector<32x1024xf32> to vector<32x128xf32>
    %37 = vector.extract_strided_slice %35 {offsets = [0, 128], sizes = [32, 128], strides = [1, 1]} : vector<32x1024xf32> to vector<32x128xf32>
    %38 = arith.addf %36, %37 : vector<32x128xf32>
    %39 = vector.extract_strided_slice %35 {offsets = [0, 256], sizes = [32, 128], strides = [1, 1]} : vector<32x1024xf32> to vector<32x128xf32>
    %40 = arith.addf %38, %39 : vector<32x128xf32>
    %41 = vector.extract_strided_slice %35 {offsets = [0, 384], sizes = [32, 128], strides = [1, 1]} : vector<32x1024xf32> to vector<32x128xf32>
    %42 = arith.addf %40, %41 : vector<32x128xf32>
    %43 = vector.extract_strided_slice %35 {offsets = [0, 512], sizes = [32, 128], strides = [1, 1]} : vector<32x1024xf32> to vector<32x128xf32>
    %44 = arith.addf %42, %43 : vector<32x128xf32>
    %45 = vector.extract_strided_slice %35 {offsets = [0, 640], sizes = [32, 128], strides = [1, 1]} : vector<32x1024xf32> to vector<32x128xf32>
    %46 = arith.addf %44, %45 : vector<32x128xf32>
    %47 = vector.extract_strided_slice %35 {offsets = [0, 768], sizes = [32, 128], strides = [1, 1]} : vector<32x1024xf32> to vector<32x128xf32>
    %48 = arith.addf %46, %47 : vector<32x128xf32>
    %49 = vector.extract_strided_slice %35 {offsets = [0, 896], sizes = [32, 128], strides = [1, 1]} : vector<32x1024xf32> to vector<32x128xf32>
    %50 = arith.addf %48, %49 : vector<32x128xf32>
    %c32_i32 = arith.constant 32 : i32
    %51 = tpu.dynamic_rotate %50 by %c32_i32 dim 1 : vector<32x128xf32>, i32 -> vector<32x128xf32>
    %52 = arith.addf %50, %51 : vector<32x128xf32>
    %c64_i32 = arith.constant 64 : i32
    %53 = tpu.dynamic_rotate %52 by %c64_i32 dim 1 : vector<32x128xf32>, i32 -> vector<32x128xf32>
    %54 = arith.addf %52, %53 : vector<32x128xf32>
    %55 = vector.extract_strided_slice %54 {offsets = [0, 0], sizes = [32, 32], strides = [1, 1]} : vector<32x128xf32> to vector<32x32xf32>
    %cst_10 = arith.constant dense<0.000000e+00> : vector<16x32xf32>
    %56 = tpu.matmul %3, %55, %cst_10 {dimension_numbers = #tpu.dot_dimension_numbers<[1], [0], [0], [1], [0, 0, 1, 1], [], []>} : vector<16x32xf32>, vector<32x32xf32>, vector<16x32xf32> -> vector<16x32xf32>
    %cst_11 = arith.constant dense<0.000000e+00> : vector<16x128xf32>
    %57 = tpu.matmul %22, %7, %cst_11 {dimension_numbers = #tpu.dot_dimension_numbers<[1], [0], [0], [1], [0, 0, 1, 1], [], []>} : vector<16x32xf32>, vector<32x128xf32>, vector<16x128xf32> -> vector<16x128xf32>
    %58 = vector.broadcast %9 : vector<1x128xf32> to vector<16x128xf32>
    %59 = arith.addf %57, %58 : vector<16x128xf32>
    %60 = vector.extract_strided_slice %59 {offsets = [0, 0], sizes = [16, 32], strides = [1, 1]} : vector<16x128xf32> to vector<16x32xf32>
    %61 = arith.addf %56, %60 : vector<16x32xf32>
    %62 = vector.extract_strided_slice %59 {offsets = [0, 32], sizes = [16, 32], strides = [1, 1]} : vector<16x128xf32> to vector<16x32xf32>
    %63 = vector.extract_strided_slice %59 {offsets = [0, 64], sizes = [16, 32], strides = [1, 1]} : vector<16x128xf32> to vector<16x32xf32>
    %64 = vector.extract_strided_slice %59 {offsets = [0, 96], sizes = [16, 32], strides = [1, 1]} : vector<16x128xf32> to vector<16x32xf32>
    %cst_12 = arith.constant dense<0.000000e+00> : vector<16x96xf32>
    %65 = tpu.matmul %61, %8, %cst_12 {dimension_numbers = #tpu.dot_dimension_numbers<[1], [0], [0], [1], [0, 0, 1, 1], [], []>} : vector<16x32xf32>, vector<32x96xf32>, vector<16x96xf32> -> vector<16x96xf32>
    %66 = vector.broadcast %10 : vector<1x96xf32> to vector<16x96xf32>
    %67 = arith.addf %65, %66 : vector<16x96xf32>
    %68 = vector.extract_strided_slice %67 {offsets = [0, 0], sizes = [16, 32], strides = [1, 1]} : vector<16x96xf32> to vector<16x32xf32>
    %69 = arith.addf %68, %62 : vector<16x32xf32>
    %70 = arith.negf %69 : vector<16x32xf32>
    %71 = math.exp %70 : vector<16x32xf32>
    %cst_13 = arith.constant 1.000000e+00 : f32
    %72 = vector.broadcast %cst_13 : f32 to vector<16x32xf32>
    %73 = arith.addf %72, %71 : vector<16x32xf32>
    %74 = arith.divf %72, %73 : vector<16x32xf32>
    %75 = vector.extract_strided_slice %67 {offsets = [0, 32], sizes = [16, 32], strides = [1, 1]} : vector<16x96xf32> to vector<16x32xf32>
    %76 = arith.addf %75, %63 : vector<16x32xf32>
    %77 = arith.negf %76 : vector<16x32xf32>
    %78 = math.exp %77 : vector<16x32xf32>
    %cst_14 = arith.constant 1.000000e+00 : f32
    %79 = vector.broadcast %cst_14 : f32 to vector<16x32xf32>
    %80 = arith.addf %79, %78 : vector<16x32xf32>
    %81 = arith.divf %79, %80 : vector<16x32xf32>
    %82 = vector.extract_strided_slice %67 {offsets = [0, 64], sizes = [16, 32], strides = [1, 1]} : vector<16x96xf32> to vector<16x32xf32>
    %83 = arith.mulf %74, %64 : vector<16x32xf32>
    %84 = arith.addf %82, %83 : vector<16x32xf32>
    %85 = math.tanh %84 : vector<16x32xf32>
    %cst_15 = arith.constant 1.000000e+00 : f32
    %86 = vector.broadcast %cst_15 : f32 to vector<16x32xf32>
    %87 = arith.subf %86, %81 : vector<16x32xf32>
    %88 = arith.mulf %87, %85 : vector<16x32xf32>
    %89 = arith.mulf %81, %22 : vector<16x32xf32>
    %90 = arith.addf %88, %89 : vector<16x32xf32>
    %91 = tpu.concatenate %90, %67 in 1 : vector<16x32xf32>, vector<16x96xf32> -> vector<16x128xf32>
    %c0_16 = arith.constant 0 : index
    %c0_17 = arith.constant 0 : index
    %92 = vector.load %arg3[%c0_16, %c0_17] : memref<16x128xf32, #tpu.memory_space<vmem>>, vector<16x128xf32>
    tpu.vector_store %arg3[%c0_16, %c0_17], %91 {strides = array<i32>} : memref<16x128xf32, #tpu.memory_space<vmem>>, vector<16x128xf32>,
    return
  }
}

</mosaic_0001>

<llo_original>
// kernel: message_passing_forward.1
$region0: #{message_passing_forward.1}
  #allocation0 [shape = 'u32[]', space=smem, size = 0x4, offset = 0x4, fixed_abs, tag = 'smem constant byte address 0x4 - core index']
  #allocation1 [shape = 'u32[144,128]{1,0:T(1,128)}', space=vmem, size = 0x12000, scoped, tag = 'internal scratch']
  %s0 = inlined_call_operand.vmem [shape: f32[48,40], index: 0, kind: input, shape index: {}]
  %s1 = inlined_call_operand.vmem [shape: f32[48,224], index: 1, kind: input, shape index: {}]
  %s2 = inlined_call_operand.hbm [shape: f32[72,1024], index: 2, kind: input, shape index: {}]
  %s3 = inlined_call_operand.hbm [shape: f32[16,128], index: 3, kind: output, shape index: {}]
  %s4 = sld [smem:[#allocation0]]
  $region26: #{message_passing_forward.1} parent=0
    _
  %s6 = ssub.s32 1, %s4
  %s7 = scalar_select 0, %s6, %s4
  $region1: #{message_passing_forward.1} parent=0
    #allocation2 [shape = 'u8[294912]{0}', space=vmem, size = 0x48000, scoped, tag = 'input window, operand 2, single buffered']
    #allocation3 [shape = 's32[1]{0}', space=sflag, size = 0x4, scoped, tag = 'scoped memory for message_passing_forward.1']
    #allocation4 [shape = 's32[1]{0}', space=sflag, size = 0x4, scoped, tag = 'scoped memory for message_passing_forward.1']
    #allocation5 [shape = 'u8[8192]{0}', space=vmem, size = 0x2000, scoped, tag = 'output window, operand 0, single buffered']
    %8 = vsyncpa [#allocation3], 0
    %9 = vsyncpa [#allocation4], 0
    // Predicated region
    $region2: #{message_passing_forward.1} parent=1 // pred_check
      _
    $region3: #{message_passing_forward.1} parent=1 // pred_check_branch
      %11 = sbr.rel (0) target = $region5
    $region4: #{message_passing_forward.1} parent=1 // pred_region
      _
    $region5: #{message_passing_forward.1} parent=1 // pred_fallthru
      _
    // Predicated region
    $region6: #{message_passing_forward.1} parent=1 // pred_check
      _
    $region7: #{message_passing_forward.1} parent=1 // pred_check_branch
      %13 = sbr.rel (0) target = $region9
    $region8: #{message_passing_forward.1} parent=1 // pred_region
      _
    $region9: #{message_passing_forward.1} parent=1 // pred_fallthru
      _
    // Predicated region
    $region10: #{message_passing_forward.1} parent=1 // pred_check
      _
    $region11: #{message_passing_forward.1} parent=1 // pred_check_branch
      %15 = sbr.rel (0) target = $region13
    $region12: #{message_passing_forward.1} parent=1 // pred_region
      %s17 = ssub.s32 9216, 9216
      %18 = vsyncadd [#allocation3], %s17
      %s19 = sshll.u32 [#allocation2], 4
      %s20 = int_to_ptr.vmem [resolvable:$true] %s19
      %25 = dma.hbm_to_vmem [thread:$0]  %s2, 9216, %s20, [#allocation3], 1024, 1024, 64
    $region13: #{message_passing_forward.1} parent=1 // pred_fallthru
      _
    // Predicated region
    $region14: #{message_passing_forward.1} parent=1 // pred_check
      _
    $region15: #{message_passing_forward.1} parent=1 // pred_check_branch
      %27 = sbr.rel (0) target = $region17
    $region16: #{message_passing_forward.1} parent=1 // pred_region
      %28 = dma.done [#allocation3], 9216
    $region17: #{message_passing_forward.1} parent=1 // pred_fallthru
      _
    %v29 = vld [vmem:[%s0] sm:$0xff]
    %v30 = vld [vmem:[%s0 + $0x8] sm:$0xff]
    %v31 = vld [vmem:[%s0 + $0x10] sm:$0xff]
    %v32 = vld [vmem:[%s0 + $0x18] sm:$0xff]
    %v33 = vld [vmem:[%s0 + $0x20] sm:$0xff]
    %v34 = vld [vmem:[%s0 + $0x28] sm:$0xff]
    %v35 = vld [vmem:[%s1] sm:$0xff]
    %v36 = vld [vmem:[%s1 + $0x8] sm:$0xff]
    %v37 = vld [vmem:[%s1 + $0x10] sm:$0xff]
    %v38 = vld [vmem:[%s1 + $0x18] sm:$0xff]
    %v39 = vld [vmem:[%s1 + $0x20] sm:$0xff]
    %v40 = vld [vmem:[%s1 + $0x28] sm:$0xff]
    %v41 = vld [vmem:[%s1 + $0x30] sm:$0xff]
    %v42 = vld [vmem:[%s1 + $0x38] sm:$0xff]
    %v43 = vld [vmem:[%s1 + $0x40] sm:$0xff]
    %v44 = vld [vmem:[%s1 + $0x48] sm:$0xff]
    %v45 = vld [vmem:[%s1 + $0x50] sm:$0xff]
    %v46 = vld [vmem:[#allocation2] sm:$0xff]
    %v47 = vld [vmem:[#allocation2 + $0x8] sm:$0xff]
    %v48 = vld [vmem:[#allocation2 + $0x10] sm:$0xff]
    %v49 = vld [vmem:[#allocation2 + $0x18] sm:$0xff]
    %v50 = vld [vmem:[#allocation2 + $0x20] sm:$0xff]
    %v51 = vld [vmem:[#allocation2 + $0x28] sm:$0xff]
    %v52 = vld [vmem:[#allocation2 + $0x30] sm:$0xff]
    %v53 = vld [vmem:[#allocation2 + $0x38] sm:$0xff]
    %v54 = vld [vmem:[#allocation2 + $0x40] sm:$0xff]
    %v55 = vld [vmem:[#allocation2 + $0x48] sm:$0xff]
    %v56 = vld [vmem:[#allocation2 + $0x50] sm:$0xff]
    %v57 = vld [vmem:[#allocation2 + $0x58] sm:$0xff]
    %v58 = vld [vmem:[#allocation2 + $0x60] sm:$0xff]
    %v59 = vld [vmem:[#allocation2 + $0x68] sm:$0xff]
    %v60 = vld [vmem:[#allocation2 + $0x70] sm:$0xff]
    %v61 = vld [vmem:[#allocation2 + $0x78] sm:$0xff]
    %v62 = vld [vmem:[#allocation2 + $0x80] sm:$0xff]
    %v63 = vld [vmem:[#allocation2 + $0x88] sm:$0xff]
    %v64 = vld [vmem:[#allocation2 + $0x90] sm:$0xff]
    %v65 = vld [vmem:[#allocation2 + $0x98] sm:$0xff]
    %v66 = vld [vmem:[#allocation2 + $0xa0] sm:$0xff]
    %v67 = vld [vmem:[#allocation2 + $0xa8] sm:$0xff]
    %v68 = vld [vmem:[#allocation2 + $0xb0] sm:$0xff]
    %v69 = vld [vmem:[#allocation2 + $0xb8] sm:$0xff]
    %v70 = vld [vmem:[#allocation2 + $0xc0] sm:$0xff]
    %v71 = vld [vmem:[#allocation2 + $0xc8] sm:$0xff]
    %v72 = vld [vmem:[#allocation2 + $0xd0] sm:$0xff]
    %v73 = vld [vmem:[#allocation2 + $0xd8] sm:$0xff]
    %v74 = vld [vmem:[#allocation2 + $0xe0] sm:$0xff]
    %v75 = vld [vmem:[#allocation2 + $0xe8] sm:$0xff]
    %v76 = vld [vmem:[#allocation2 + $0xf0] sm:$0xff]
    %v77 = vld [vmem:[#allocation2 + $0xf8] sm:$0xff]
    %v78 = vld [vmem:[#allocation2 + $0x100] sm:$0xff]
    %v79 = vld [vmem:[#allocation2 + $0x108] sm:$0xff]
    %v80 = vld [vmem:[#allocation2 + $0x110] sm:$0xff]
    %v81 = vld [vmem:[#allocation2 + $0x118] sm:$0xff]
    %v82 = vld [vmem:[#allocation2 + $0x120] sm:$0xff]
    %v83 = vld [vmem:[#allocation2 + $0x128] sm:$0xff]
    %v84 = vld [vmem:[#allocation2 + $0x130] sm:$0xff]
    %v85 = vld [vmem:[#allocation2 + $0x138] sm:$0xff]
    %v86 = vld [vmem:[#allocation2 + $0x140] sm:$0xff]
    %v87 = vld [vmem:[#allocation2 + $0x148] sm:$0xff]
    %v88 = vld [vmem:[#allocation2 + $0x150] sm:$0xff]
    %v89 = vld [vmem:[#allocation2 + $0x158] sm:$0xff]
    %v90 = vld [vmem:[#allocation2 + $0x160] sm:$0xff]
    %v91 = vld [vmem:[#allocation2 + $0x168] sm:$0xff]
    %v92 = vld [vmem:[#allocation2 + $0x170] sm:$0xff]
    %v93 = vld [vmem:[#allocation2 + $0x178] sm:$0xff]
    %v94 = vld [vmem:[#allocation2 + $0x180] sm:$0xff]
    %v95 = vld [vmem:[#allocation2 + $0x188] sm:$0xff]
    %v96 = vld [vmem:[#allocation2 + $0x190] sm:$0xff]
    %v97 = vld [vmem:[#allocation2 + $0x198] sm:$0xff]
    %v98 = vld [vmem:[#allocation2 + $0x1a0] sm:$0xff]
    %v99 = vld [vmem:[#allocation2 + $0x1a8] sm:$0xff]
    %v100 = vld [vmem:[#allocation2 + $0x1b0] sm:$0xff]
    %v101 = vld [vmem:[#allocation2 + $0x1b8] sm:$0xff]
    %v102 = vld [vmem:[#allocation2 + $0x1c0] sm:$0xff]
    %v103 = vld [vmem:[#allocation2 + $0x1c8] sm:$0xff]
    %v104 = vld [vmem:[#allocation2 + $0x1d0] sm:$0xff]
    %v105 = vld [vmem:[#allocation2 + $0x1d8] sm:$0xff]
    %v106 = vld [vmem:[#allocation2 + $0x1e0] sm:$0xff]
    %v107 = vld [vmem:[#allocation2 + $0x1e8] sm:$0xff]
    %v108 = vld [vmem:[#allocation2 + $0x1f0] sm:$0xff]
    %v109 = vld [vmem:[#allocation2 + $0x1f8] sm:$0xff]
    %v110 = vld [vmem:[#allocation2 + $0x200] sm:$0xff]
    %v111 = vld [vmem:[#allocation2 + $0x208] sm:$0xff]
    %v112 = vld [vmem:[#allocation2 + $0x210] sm:$0xff]
    %v113 = vld [vmem:[#allocation2 + $0x218] sm:$0xff]
    %v114 = vld [vmem:[#allocation2 + $0x220] sm:$0xff]
    %v115 = vld [vmem:[#allocation2 + $0x228] sm:$0xff]
    %v116 = vld [vmem:[#allocation2 + $0x230] sm:$0xff]
    %v117 = vld [vmem:[#allocation2 + $0x238] sm:$0xff]
    %v118 = vlaneseq
    %v119 = vshrl.u32 %v118, 7
    %v120 = vsub.s32 1, %v119
    %v121 = vrot.slane %v43, %v120
    %124 = vrot.lane.b32.xlu0 %v29, 96
    %v125 = vpop.permute.xlu0 %124
    %126 = vrot.lane.b32.xlu0 %v30, 96
    %v127 = vpop.permute.xlu0 %126
    %129 = vrot.lane.b32.xlu0 %v121, 96
    %v130 = vpop.permute.xlu0 %129
    %vm132 = vcmask 64512
    %v133 = vsel %vm132, %v125, 0
    %v135 = vsel %vm132, %v127, 0
    %137 = vmatprep.subr.mxu0 0.0
    %138 = vmatpush1.msra.mxu0 0.0
    %139 = vmatprep.subr.mxu0 0.0
    %140 = vmatpush1.msra.mxu0 0.0
    %141 = vmatprep.subr.mxu0 0.0
    %142 = vmatpush1.msra.mxu0 0.0
    %143 = vmatprep.subr.mxu0 0.0
    %144 = vmatpush1.msra.mxu0 0.0
    %145 = vmatprep.subr.mxu0 0.0
    %146 = vmatpush1.msra.mxu0 0.0
    %147 = vmatprep.subr.mxu0 0.0
    %148 = vmatpush1.msra.mxu0 0.0
    %149 = vmatprep.subr.mxu0 0.0
    %150 = vmatpush1.msra.mxu0 0.0
    %151 = vmatprep.subr.mxu0 0.0
    %152 = vmatpush1.msra.mxu0 0.0
    %153 = vmatprep.subr.mxu0 0.0
    %154 = vmatpush1.msra.mxu0 0.0
    %155 = vmatprep.subr.mxu0 0.0
    %156 = vmatpush1.msra.mxu0 0.0
    %157 = vmatprep.subr.mxu0 0.0
    %158 = vmatpush1.msra.mxu0 0.0
    %159 = vmatprep.subr.mxu0 0.0
    %160 = vmatpush1.msra.mxu0 0.0
    %161 = vmatprep.subr.mxu0 0.0
    %162 = vmatpush1.msra.mxu0 0.0
    %163 = vmatprep.subr.mxu0 0.0
    %164 = vmatpush1.msra.mxu0 0.0
    %165 = vmatprep.subr.mxu0 0.0
    %166 = vmatpush1.msra.mxu0 0.0
    %167 = vmatprep.subr.mxu0 0.0
    %168 = vmatpush1.msra.mxu0 %v45
    %169 = vmatprep.subr.mxu0 0.0
    %170 = vmatpush2.msra.mxu0 0.0
    %171 = vmatprep.subr.mxu0 0.0
    %172 = vmatpush2.msra.mxu0 0.0
    %173 = vmatprep.subr.mxu0 0.0
    %174 = vmatpush2.msra.mxu0 0.0
    %175 = vmatprep.subr.mxu0 0.0
    %176 = vmatpush2.msra.mxu0 0.0
    %177 = vmatprep.subr.mxu0 0.0
    %178 = vmatpush2.msra.mxu0 0.0
    %179 = vmatprep.subr.mxu0 0.0
    %180 = vmatpush2.msra.mxu0 0.0
    %181 = vmatprep.subr.mxu0 0.0
    %182 = vmatpush2.msra.mxu0 0.0
    %183 = vmatprep.subr.mxu0 0.0
    %184 = vmatpush2.msra.mxu0 0.0
    %185 = vmatprep.subr.mxu0 0.0
    %186 = vmatpush2.msra.mxu0 0.0
    %187 = vmatprep.subr.mxu0 0.0
    %188 = vmatpush2.msra.mxu0 0.0
    %189 = vmatprep.subr.mxu0 0.0
    %190 = vmatpush2.msra.mxu0 0.0
    %191 = vmatprep.subr.mxu0 0.0
    %192 = vmatpush2.msra.mxu0 0.0
    %193 = vmatprep.subr.mxu0 0.0
    %194 = vmatpush2.msra.mxu0 0.0
    %195 = vmatprep.subr.mxu0 0.0
    %196 = vmatpush2.msra.mxu0 0.0
    %197 = vmatprep.subr.mxu0 0.0
    %198 = vmatpush2.msra.mxu0 0.0
    %199 = vmatprep.subr.mxu0 0.0
    %200 = vmatpush2.msra.mxu0 0.0
    %201 = vmatprep.mubr.f32.mxu0 0.0
    %202 = vmatmul.mubr.f32.gmra.mxu0 %v133
    %v203 = vpop.f32.mrf.mxu0
    %v204 = vadd.f32 %v130, %v203
    %v205 = vpop.f32.mrf.mxu0
    %206 = vmatprep.mubr.f32.mxu0 0.0
    %207 = vmatmul.mubr.f32.gmra.mxu0 %v135
    %v208 = vpop.f32.mrf.mxu0
    %v209 = vadd.f32 %v130, %v208
    %v210 = vpop.f32.mrf.mxu0
    %211 = vdwg.mxu0
    %v212 = vmax.f32 %v204, 0.0
    %v213 = vmax.f32 %v209, 0.0
    %215 = vset.pattern.permute.xlu0 16
    %216 = vperm.xlu0 %215, %v31
    %v217 = vpop.permute.xlu0 %216
    %220 = vset.pattern.permute.xlu0 16
    %221 = vperm.xlu0 %220, %v32
    %v222 = vpop.permute.xlu0 %221
    %225 = vset.pattern.permute.xlu0 16
    %226 = vperm.xlu0 %225, %v33
    %v227 = vpop.permute.xlu0 %226
    %230 = vset.pattern.permute.xlu0 16
    %231 = vperm.xlu0 %230, %v34
    %v232 = vpop.permute.xlu0 %231
    %v234 = vmul.f32 %v217, %v121
    %v235 = vmul.f32 %v222, %v121
    %v236 = vmul.f32 %v227, %v121
    %v237 = vmul.f32 %v232, %v121
    %238 = vrot.lane.b32.xlu0 %v121, 64
    %v239 = vpop.permute.xlu0 %238
    %v241 = vadd.f32 %v234, %v239
    %v242 = vadd.f32 %v235, %v239
    %v243 = vadd.f32 %v236, %v239
    %v244 = vadd.f32 %v237, %v239
    %v245 = vmax.f32 %v241, 0.0
    %v246 = vmax.f32 %v242, 0.0
    %v247 = vmax.f32 %v243, 0.0
    %v248 = vmax.f32 %v244, 0.0
    %v249 = vlaneseq
    %v250 = vshrl.u32 %v249, 7
    %v251 = vsub.s32 0, %v250
    %v252 = vrot.slane %v110, %v251
    %v253 = vlaneseq
    %v254 = vshrl.u32 %v253, 7
    %v255 = vsub.s32 0, %v254
    %v256 = vrot.slane %v111, %v255
    %v257 = vlaneseq
    %v258 = vshrl.u32 %v257, 7
    %v259 = vsub.s32 0, %v258
    %v260 = vrot.slane %v112, %v259
    %v261 = vlaneseq
    %v262 = vshrl.u32 %v261, 7
    %v263 = vsub.s32 0, %v262
    %v264 = vrot.slane %v113, %v263
    %v265 = vlaneseq
    %v266 = vshrl.u32 %v265, 7
    %v267 = vsub.s32 0, %v266
    %v268 = vrot.slane %v114, %v267
    %v269 = vlaneseq
    %v270 = vshrl.u32 %v269, 7
    %v271 = vsub.s32 0, %v270
    %v272 = vrot.slane %v115, %v271
    %v273 = vlaneseq
    %v274 = vshrl.u32 %v273, 7
    %v275 = vsub.s32 0, %v274
    %v276 = vrot.slane %v116, %v275
    %v277 = vlaneseq
    %v278 = vshrl.u32 %v277, 7
    %v279 = vsub.s32 0, %v278
    %v280 = vrot.slane %v117, %v279
    %vm281 = vcmask 261120
    %v283 = vsel %vm281, %v245, 0
    %v286 = vsel %vm281, %v246, 0
    %v289 = vsel %vm281, %v247, 0
    %v292 = vsel %vm281, %v248, 0
    %294 = vmatprep.subr.mxu0 0.0
    %295 = vmatpush1.msra.mxu0 0.0
    %296 = vmatprep.subr.mxu0 0.0
    %297 = vmatpush1.msra.mxu0 0.0
    %298 = vmatprep.subr.mxu0 0.0
    %299 = vmatpush1.msra.mxu0 0.0
    %300 = vmatprep.subr.mxu0 0.0
    %301 = vmatpush1.msra.mxu0 0.0
    %302 = vmatprep.subr.mxu0 0.0
    %303 = vmatpush1.msra.mxu0 0.0
    %304 = vmatprep.subr.mxu0 0.0
    %305 = vmatpush1.msra.mxu0 0.0
    %306 = vmatprep.subr.mxu0 0.0
    %307 = vmatpush1.msra.mxu0 0.0
    %308 = vmatprep.subr.mxu0 0.0
    %309 = vmatpush1.msra.mxu0 0.0
    %310 = vmatprep.subr.mxu0 0.0
    %311 = vmatpush1.msra.mxu0 0.0
    %312 = vmatprep.subr.mxu0 0.0
    %313 = vmatpush1.msra.mxu0 0.0
    %314 = vmatprep.subr.mxu0 0.0
    %315 = vmatpush1.msra.mxu0 0.0
    %316 = vmatprep.subr.mxu0 0.0
    %317 = vmatpush1.msra.mxu0 0.0
    %318 = vmatprep.subr.mxu0 %v71
    %319 = vmatpush1.msra.mxu0 %v70
    %320 = vmatprep.subr.mxu0 %v63
    %321 = vmatpush1.msra.mxu0 %v62
    %322 = vmatprep.subr.mxu0 %v55
    %323 = vmatpush1.msra.mxu0 %v54
    %324 = vmatprep.subr.mxu0 %v47
    %325 = vmatpush1.msra.mxu0 %v46
    %326 = vmatprep.subr.mxu0 0.0
    %327 = vmatpush2.msra.mxu0 0.0
    %328 = vmatprep.subr.mxu0 0.0
    %329 = vmatpush2.msra.mxu0 0.0
    %330 = vmatprep.subr.mxu0 0.0
    %331 = vmatpush2.msra.mxu0 0.0
    %332 = vmatprep.subr.mxu0 0.0
    %333 = vmatpush2.msra.mxu0 0.0
    %334 = vmatprep.subr.mxu0 0.0
    %335 = vmatpush2.msra.mxu0 0.0
    %336 = vmatprep.subr.mxu0 0.0
    %337 = vmatpush2.msra.mxu0 0.0
    %338 = vmatprep.subr.mxu0 0.0
    %339 = vmatpush2.msra.mxu0 0.0
    %340 = vmatprep.subr.mxu0 0.0
    %341 = vmatpush2.msra.mxu0 0.0
    %342 = vmatprep.subr.mxu0 0.0
    %343 = vmatpush2.msra.mxu0 0.0
    %344 = vmatprep.subr.mxu0 0.0
    %345 = vmatpush2.msra.mxu0 0.0
    %346 = vmatprep.subr.mxu0 0.0
    %347 = vmatpush2.msra.mxu0 0.0
    %348 = vmatprep.subr.mxu0 0.0
    %349 = vmatpush2.msra.mxu0 0.0
    %350 = vmatprep.subr.mxu0 0.0
    %351 = vmatpush2.msra.mxu0 0.0
    %352 = vmatprep.subr.mxu0 0.0
    %353 = vmatpush2.msra.mxu0 0.0
    %354 = vmatprep.subr.mxu0 0.0
    %355 = vmatpush2.msra.mxu0 0.0
    %356 = vmatprep.subr.mxu0 0.0
    %357 = vmatpush2.msra.mxu0 0.0
    %358 = vmatprep.mubr.f32.mxu0 0.0
    %359 = vmatmul.mubr.f32.gmra.mxu0 %v283
    %v360 = vpop.f32.mrf.mxu0
    %v361 = vadd.f32 %v252, %v360
    %v362 = vpop.f32.mrf.mxu0
    %v363 = vadd.f32 %v256, %v362
    %364 = vmatprep.mubr.f32.mxu0 0.0
    %365 = vmatmul.mubr.f32.gmra.mxu0 %v286
    %v366 = vpop.f32.mrf.mxu0
    %v367 = vadd.f32 %v252, %v366
    %v368 = vpop.f32.mrf.mxu0
    %v369 = vadd.f32 %v256, %v368
    %370 = vmatprep.mubr.f32.mxu0 0.0
    %371 = vmatmul.mubr.f32.gmra.mxu0 %v289
    %v372 = vpop.f32.mrf.mxu0
    %v373 = vadd.f32 %v252, %v372
    %v374 = vpop.f32.mrf.mxu0
    %v375 = vadd.f32 %v256, %v374
    %376 = vmatprep.mubr.f32.mxu0 0.0
    %377 = vmatmul.mubr.f32.gmra.mxu0 %v292
    %v378 = vpop.f32.mrf.mxu0
    %v379 = vadd.f32 %v252, %v378
    %v380 = vpop.f32.mrf.mxu0
    %v381 = vadd.f32 %v256, %v380
    %382 = vdwg.mxu0
    %383 = vmatprep.subr.mxu0 0.0
    %384 = vmatpush1.msra.mxu0 0.0
    %385 = vmatprep.subr.mxu0 0.0
    %386 = vmatpush1.msra.mxu0 0.0
    %387 = vmatprep.subr.mxu0 0.0
    %388 = vmatpush1.msra.mxu0 0.0
    %389 = vmatprep.subr.mxu0 0.0
    %390 = vmatpush1.msra.mxu0 0.0
    %391 = vmatprep.subr.mxu0 0.0
    %392 = vmatpush1.msra.mxu0 0.0
    %393 = vmatprep.subr.mxu0 0.0
    %394 = vmatpush1.msra.mxu0 0.0
    %395 = vmatprep.subr.mxu0 0.0
    %396 = vmatpush1.msra.mxu0 0.0
    %397 = vmatprep.subr.mxu0 0.0
    %398 = vmatpush1.msra.mxu0 0.0
    %399 = vmatprep.subr.mxu0 0.0
    %400 = vmatpush1.msra.mxu0 0.0
    %401 = vmatprep.subr.mxu0 0.0
    %402 = vmatpush1.msra.mxu0 0.0
    %403 = vmatprep.subr.mxu0 0.0
    %404 = vmatpush1.msra.mxu0 0.0
    %405 = vmatprep.subr.mxu0 0.0
    %406 = vmatpush1.msra.mxu0 0.0
    %407 = vmatprep.subr.mxu0 %v73
    %408 = vmatpush1.msra.mxu0 %v72
    %409 = vmatprep.subr.mxu0 %v65
    %410 = vmatpush1.msra.mxu0 %v64
    %411 = vmatprep.subr.mxu0 %v57
    %412 = vmatpush1.msra.mxu0 %v56
    %413 = vmatprep.subr.mxu0 %v49
    %414 = vmatpush1.msra.mxu0 %v48
    %415 = vmatprep.subr.mxu0 0.0
    %416 = vmatpush2.msra.mxu0 0.0
    %417 = vmatprep.subr.mxu0 0.0
    %418 = vmatpush2.msra.mxu0 0.0
    %419 = vmatprep.subr.mxu0 0.0
    %420 = vmatpush2.msra.mxu0 0.0
    %421 = vmatprep.subr.mxu0 0.0
    %422 = vmatpush2.msra.mxu0 0.0
    %423 = vmatprep.subr.mxu0 0.0
    %424 = vmatpush2.msra.mxu0 0.0
    %425 = vmatprep.subr.mxu0 0.0
    %426 = vmatpush2.msra.mxu0 0.0
    %427 = vmatprep.subr.mxu0 0.0
    %428 = vmatpush2.msra.mxu0 0.0
    %429 = vmatprep.subr.mxu0 0.0
    %430 = vmatpush2.msra.mxu0 0.0
    %431 = vmatprep.subr.mxu0 0.0
    %432 = vmatpush2.msra.mxu0 0.0
    %433 = vmatprep.subr.mxu0 0.0
    %434 = vmatpush2.msra.mxu0 0.0
    %435 = vmatprep.subr.mxu0 0.0
    %436 = vmatpush2.msra.mxu0 0.0
    %437 = vmatprep.subr.mxu0 0.0
    %438 = vmatpush2.msra.mxu0 0.0
    %439 = vmatprep.subr.mxu0 0.0
    %440 = vmatpush2.msra.mxu0 0.0
    %441 = vmatprep.subr.mxu0 0.0
    %442 = vmatpush2.msra.mxu0 0.0
    %443 = vmatprep.subr.mxu0 0.0
    %444 = vmatpush2.msra.mxu0 0.0
    %445 = vmatprep.subr.mxu0 0.0
    %446 = vmatpush2.msra.mxu0 0.0
    %447 = vmatprep.mubr.f32.mxu0 0.0
    %448 = vmatmul.mubr.f32.gmra.mxu0 %v283
    %v449 = vpop.f32.mrf.mxu0
    %v450 = vadd.f32 %v260, %v449
    %v451 = vpop.f32.mrf.mxu0
    %v452 = vadd.f32 %v264, %v451
    %453 = vmatprep.mubr.f32.mxu0 0.0
    %454 = vmatmul.mubr.f32.gmra.mxu0 %v286
    %v455 = vpop.f32.mrf.mxu0
    %v456 = vadd.f32 %v260, %v455
    %v457 = vpop.f32.mrf.mxu0
    %v458 = vadd.f32 %v264, %v457
    %459 = vmatprep.mubr.f32.mxu0 0.0
    %460 = vmatmul.mubr.f32.gmra.mxu0 %v289
    %v461 = vpop.f32.mrf.mxu0
    %v462 = vadd.f32 %v260, %v461
    %v463 = vpop.f32.mrf.mxu0
    %v464 = vadd.f32 %v264, %v463
    %465 = vmatprep.mubr.f32.mxu0 0.0
    %466 = vmatmul.mubr.f32.gmra.mxu0 %v292
    %v467 = vpop.f32.mrf.mxu0
    %v468 = vadd.f32 %v260, %v467
    %v469 = vpop.f32.mrf.mxu0
    %v470 = vadd.f32 %v264, %v469
    %471 = vdwg.mxu0
    %472 = vmatprep.subr.mxu0 0.0
    %473 = vmatpush1.msra.mxu0 0.0
    %474 = vmatprep.subr.mxu0 0.0
    %475 = vmatpush1.msra.mxu0 0.0
    %476 = vmatprep.subr.mxu0 0.0
    %477 = vmatpush1.msra.mxu0 0.0
    %478 = vmatprep.subr.mxu0 0.0
    %479 = vmatpush1.msra.mxu0 0.0
    %480 = vmatprep.subr.mxu0 0.0
    %481 = vmatpush1.msra.mxu0 0.0
    %482 = vmatprep.subr.mxu0 0.0
    %483 = vmatpush1.msra.mxu0 0.0
    %484 = vmatprep.subr.mxu0 0.0
    %485 = vmatpush1.msra.mxu0 0.0
    %486 = vmatprep.subr.mxu0 0.0
    %487 = vmatpush1.msra.mxu0 0.0
    %488 = vmatprep.subr.mxu0 0.0
    %489 = vmatpush1.msra.mxu0 0.0
    %490 = vmatprep.subr.mxu0 0.0
    %491 = vmatpush1.msra.mxu0 0.0
    %492 = vmatprep.subr.mxu0 0.0
    %493 = vmatpush1.msra.mxu0 0.0
    %494 = vmatprep.subr.mxu0 0.0
    %495 = vmatpush1.msra.mxu0 0.0
    %496 = vmatprep.subr.mxu0 %v75
    %497 = vmatpush1.msra.mxu0 %v74
    %498 = vmatprep.subr.mxu0 %v67
    %499 = vmatpush1.msra.mxu0 %v66
    %500 = vmatprep.subr.mxu0 %v59
    %501 = vmatpush1.msra.mxu0 %v58
    %502 = vmatprep.subr.mxu0 %v51
    %503 = vmatpush1.msra.mxu0 %v50
    %504 = vmatprep.subr.mxu0 0.0
    %505 = vmatpush2.msra.mxu0 0.0
    %506 = vmatprep.subr.mxu0 0.0
    %507 = vmatpush2.msra.mxu0 0.0
    %508 = vmatprep.subr.mxu0 0.0
    %509 = vmatpush2.msra.mxu0 0.0
    %510 = vmatprep.subr.mxu0 0.0
    %511 = vmatpush2.msra.mxu0 0.0
    %512 = vmatprep.subr.mxu0 0.0
    %513 = vmatpush2.msra.mxu0 0.0
    %514 = vmatprep.subr.mxu0 0.0
    %515 = vmatpush2.msra.mxu0 0.0
    %516 = vmatprep.subr.mxu0 0.0
    %517 = vmatpush2.msra.mxu0 0.0
    %518 = vmatprep.subr.mxu0 0.0
    %519 = vmatpush2.msra.mxu0 0.0
    %520 = vmatprep.subr.mxu0 0.0
    %521 = vmatpush2.msra.mxu0 0.0
    %522 = vmatprep.subr.mxu0 0.0
    %523 = vmatpush2.msra.mxu0 0.0
    %524 = vmatprep.subr.mxu0 0.0
    %525 = vmatpush2.msra.mxu0 0.0
    %526 = vmatprep.subr.mxu0 0.0
    %527 = vmatpush2.msra.mxu0 0.0
    %528 = vmatprep.subr.mxu0 0.0
    %529 = vmatpush2.msra.mxu0 0.0
    %530 = vmatprep.subr.mxu0 0.0
    %531 = vmatpush2.msra.mxu0 0.0
    %532 = vmatprep.subr.mxu0 0.0
    %533 = vmatpush2.msra.mxu0 0.0
    %534 = vmatprep.subr.mxu0 0.0
    %535 = vmatpush2.msra.mxu0 0.0
    %536 = vmatprep.mubr.f32.mxu0 0.0
    %537 = vmatmul.mubr.f32.gmra.mxu0 %v283
    %v538 = vpop.f32.mrf.mxu0
    %v539 = vadd.f32 %v268, %v538
    %v540 = vpop.f32.mrf.mxu0
    %v541 = vadd.f32 %v272, %v540
    %542 = vmatprep.mubr.f32.mxu0 0.0
    %543 = vmatmul.mubr.f32.gmra.mxu0 %v286
    %v544 = vpop.f32.mrf.mxu0
    %v545 = vadd.f32 %v268, %v544
    %v546 = vpop.f32.mrf.mxu0
    %v547 = vadd.f32 %v272, %v546
    %548 = vmatprep.mubr.f32.mxu0 0.0
    %549 = vmatmul.mubr.f32.gmra.mxu0 %v289
    %v550 = vpop.f32.mrf.mxu0
    %v551 = vadd.f32 %v268, %v550
    %v552 = vpop.f32.mrf.mxu0
    %v553 = vadd.f32 %v272, %v552
    %554 = vmatprep.mubr.f32.mxu0 0.0
    %555 = vmatmul.mubr.f32.gmra.mxu0 %v292
    %v556 = vpop.f32.mrf.mxu0
    %v557 = vadd.f32 %v268, %v556
    %v558 = vpop.f32.mrf.mxu0
    %v559 = vadd.f32 %v272, %v558
    %560 = vdwg.mxu0
    %561 = vmatprep.subr.mxu0 0.0
    %562 = vmatpush1.msra.mxu0 0.0
    %563 = vmatprep.subr.mxu0 0.0
    %564 = vmatpush1.msra.mxu0 0.0
    %565 = vmatprep.subr.mxu0 0.0
    %566 = vmatpush1.msra.mxu0 0.0
    %567 = vmatprep.subr.mxu0 0.0
    %568 = vmatpush1.msra.mxu0 0.0
    %569 = vmatprep.subr.mxu0 0.0
    %570 = vmatpush1.msra.mxu0 0.0
    %571 = vmatprep.subr.mxu0 0.0
    %572 = vmatpush1.msra.mxu0 0.0
    %573 = vmatprep.subr.mxu0 0.0
    %574 = vmatpush1.msra.mxu0 0.0
    %575 = vmatprep.subr.mxu0 0.0
    %576 = vmatpush1.msra.mxu0 0.0
    %577 = vmatprep.subr.mxu0 0.0
    %578 = vmatpush1.msra.mxu0 0.0
    %579 = vmatprep.subr.mxu0 0.0
    %580 = vmatpush1.msra.mxu0 0.0
    %581 = vmatprep.subr.mxu0 0.0
    %582 = vmatpush1.msra.mxu0 0.0
    %583 = vmatprep.subr.mxu0 0.0
    %584 = vmatpush1.msra.mxu0 0.0
    %585 = vmatprep.subr.mxu0 %v77
    %586 = vmatpush1.msra.mxu0 %v76
    %587 = vmatprep.subr.mxu0 %v69
    %588 = vmatpush1.msra.mxu0 %v68
    %589 = vmatprep.subr.mxu0 %v61
    %590 = vmatpush1.msra.mxu0 %v60
    %591 = vmatprep.subr.mxu0 %v53
    %592 = vmatpush1.msra.mxu0 %v52
    %593 = vmatprep.subr.mxu0 0.0
    %594 = vmatpush2.msra.mxu0 0.0
    %595 = vmatprep.subr.mxu0 0.0
    %596 = vmatpush2.msra.mxu0 0.0
    %597 = vmatprep.subr.mxu0 0.0
    %598 = vmatpush2.msra.mxu0 0.0
    %599 = vmatprep.subr.mxu0 0.0
    %600 = vmatpush2.msra.mxu0 0.0
    %601 = vmatprep.subr.mxu0 0.0
    %602 = vmatpush2.msra.mxu0 0.0
    %603 = vmatprep.subr.mxu0 0.0
    %604 = vmatpush2.msra.mxu0 0.0
    %605 = vmatprep.subr.mxu0 0.0
    %606 = vmatpush2.msra.mxu0 0.0
    %607 = vmatprep.subr.mxu0 0.0
    %608 = vmatpush2.msra.mxu0 0.0
    %609 = vmatprep.subr.mxu0 0.0
    %610 = vmatpush2.msra.mxu0 0.0
    %611 = vmatprep.subr.mxu0 0.0
    %612 = vmatpush2.msra.mxu0 0.0
    %613 = vmatprep.subr.mxu0 0.0
    %614 = vmatpush2.msra.mxu0 0.0
    %615 = vmatprep.subr.mxu0 0.0
    %616 = vmatpush2.msra.mxu0 0.0
    %617 = vmatprep.subr.mxu0 0.0
    %618 = vmatpush2.msra.mxu0 0.0
    %619 = vmatprep.subr.mxu0 0.0
    %620 = vmatpush2.msra.mxu0 0.0
    %621 = vmatprep.subr.mxu0 0.0
    %622 = vmatpush2.msra.mxu0 0.0
    %623 = vmatprep.subr.mxu0 0.0
    %624 = vmatpush2.msra.mxu0 0.0
    %625 = vmatprep.mubr.f32.mxu0 0.0
    %626 = vmatmul.mubr.f32.gmra.mxu0 %v283
    %v627 = vpop.f32.mrf.mxu0
    %v628 = vadd.f32 %v276, %v627
    %v629 = vpop.f32.mrf.mxu0
    %v630 = vadd.f32 %v280, %v629
    %631 = vmatprep.mubr.f32.mxu0 0.0
    %632 = vmatmul.mubr.f32.gmra.mxu0 %v286
    %v633 = vpop.f32.mrf.mxu0
    %v634 = vadd.f32 %v276, %v633
    %v635 = vpop.f32.mrf.mxu0
    %v636 = vadd.f32 %v280, %v635
    %637 = vmatprep.mubr.f32.mxu0 0.0
    %638 = vmatmul.mubr.f32.gmra.mxu0 %v289
    %v639 = vpop.f32.mrf.mxu0
    %v640 = vadd.f32 %v276, %v639
    %v641 = vpop.f32.mrf.mxu0
    %v642 = vadd.f32 %v280, %v641
    %643 = vmatprep.mubr.f32.mxu0 0.0
    %644 = vmatmul.mubr.f32.gmra.mxu0 %v292
    %v645 = vpop.f32.mrf.mxu0
    %v646 = vadd.f32 %v276, %v645
    %v647 = vpop.f32.mrf.mxu0
    %v648 = vadd.f32 %v280, %v647
    %649 = vdwg.mxu0
    %vm650 = vcmask 130048
    %v651 = vsel %vm650, %v31, 0
    %v653 = vsel %vm650, %v32, 0
    %v655 = vsel %vm650, %v33, 0
    %v657 = vsel %vm650, %v34, 0
    %659 = vmatprep.subr.mxu0 0.0
    %660 = vmatpush1.msra.mxu0 0.0
    %661 = vmatprep.subr.mxu0 0.0
    %662 = vmatpush1.msra.mxu0 0.0
    %663 = vmatprep.subr.mxu0 0.0
    %664 = vmatpush1.msra.mxu0 0.0
    %665 = vmatprep.subr.mxu0 0.0
    %666 = vmatpush1.msra.mxu0 0.0
    %667 = vmatprep.subr.mxu0 0.0
    %668 = vmatpush1.msra.mxu0 0.0
    %669 = vmatprep.subr.mxu0 0.0
    %670 = vmatpush1.msra.mxu0 0.0
    %671 = vmatprep.subr.mxu0 0.0
    %672 = vmatpush1.msra.mxu0 0.0
    %673 = vmatprep.subr.mxu0 0.0
    %674 = vmatpush1.msra.mxu0 0.0
    %675 = vmatprep.subr.mxu0 0.0
    %676 = vmatpush1.msra.mxu0 0.0
    %677 = vmatprep.subr.mxu0 0.0
    %678 = vmatpush1.msra.mxu0 0.0
    %679 = vmatprep.subr.mxu0 0.0
    %680 = vmatpush1.msra.mxu0 0.0
    %681 = vmatprep.subr.mxu0 0.0
    %682 = vmatpush1.msra.mxu0 0.0
    %683 = vmatprep.subr.mxu0 0.0
    %684 = vmatpush1.msra.mxu0 0.0
    %685 = vmatprep.subr.mxu0 0.0
    %686 = vmatpush1.msra.mxu0 0.0
    %687 = vmatprep.subr.mxu0 0.0
    %688 = vmatpush1.msra.mxu0 %v213
    %689 = vmatprep.subr.mxu0 0.0
    %690 = vmatpush1.msra.mxu0 %v212
    %691 = vmatprep.subr.mxu0 0.0
    %692 = vmatpush2.msra.mxu0 0.0
    %693 = vmatprep.subr.mxu0 0.0
    %694 = vmatpush2.msra.mxu0 0.0
    %695 = vmatprep.subr.mxu0 0.0
    %696 = vmatpush2.msra.mxu0 0.0
    %697 = vmatprep.subr.mxu0 0.0
    %698 = vmatpush2.msra.mxu0 0.0
    %699 = vmatprep.subr.mxu0 0.0
    %700 = vmatpush2.msra.mxu0 0.0
    %701 = vmatprep.subr.mxu0 0.0
    %702 = vmatpush2.msra.mxu0 0.0
    %703 = vmatprep.subr.mxu0 0.0
    %704 = vmatpush2.msra.mxu0 0.0
    %705 = vmatprep.subr.mxu0 0.0
    %706 = vmatpush2.msra.mxu0 0.0
    %707 = vmatprep.subr.mxu0 0.0
    %708 = vmatpush2.msra.mxu0 0.0
    %709 = vmatprep.subr.mxu0 0.0
    %710 = vmatpush2.msra.mxu0 0.0
    %711 = vmatprep.subr.mxu0 0.0
    %712 = vmatpush2.msra.mxu0 0.0
    %713 = vmatprep.subr.mxu0 0.0
    %714 = vmatpush2.msra.mxu0 0.0
    %715 = vmatprep.subr.mxu0 0.0
    %716 = vmatpush2.msra.mxu0 0.0
    %717 = vmatprep.subr.mxu0 0.0
    %718 = vmatpush2.msra.mxu0 0.0
    %719 = vmatprep.subr.mxu0 0.0
    %720 = vmatpush2.msra.mxu0 0.0
    %721 = vmatprep.subr.mxu0 0.0
    %722 = vmatpush2.msra.mxu0 0.0
    %723 = vmatprep.mubr.f32.mxu0 0.0
    %724 = vmatmul.mubr.f32.gmra.mxu0 %v651
    %v725 = vpop.f32.mrf.mxu0
    %v726 = vadd.f32 0.0, %v725
    %v727 = vpop.f32.mrf.mxu0
    %728 = vmatprep.mubr.f32.mxu0 0.0
    %729 = vmatmul.mubr.f32.gmra.mxu0 %v653
    %v730 = vpop.f32.mrf.mxu0
    %v731 = vadd.f32 0.0, %v730
    %v732 = vpop.f32.mrf.mxu0
    %733 = vmatprep.mubr.f32.mxu0 0.0
    %734 = vmatmul.mubr.f32.gmra.mxu0 %v655
    %v735 = vpop.f32.mrf.mxu0
    %v736 = vadd.f32 0.0, %v735
    %v737 = vpop.f32.mrf.mxu0
    %738 = vmatprep.mubr.f32.mxu0 0.0
    %739 = vmatmul.mubr.f32.gmra.mxu0 %v657
    %v740 = vpop.f32.mrf.mxu0
    %v741 = vadd.f32 0.0, %v740
    %v742 = vpop.f32.mrf.mxu0
    %743 = vdwg.mxu0
    %v745 = vsel %vm281, %v726, 0
    %v748 = vsel %vm281, %v731, 0
    %v751 = vsel %vm281, %v736, 0
    %v754 = vsel %vm281, %v741, 0
    %756 = vmatprep.subr.mxu0 0.0
    %757 = vmatpush1.msra.mxu0 0.0
    %758 = vmatprep.subr.mxu0 0.0
    %759 = vmatpush1.msra.mxu0 0.0
    %760 = vmatprep.subr.mxu0 0.0
    %761 = vmatpush1.msra.mxu0 0.0
    %762 = vmatprep.subr.mxu0 0.0
    %763 = vmatpush1.msra.mxu0 0.0
    %764 = vmatprep.subr.mxu0 0.0
    %765 = vmatpush1.msra.mxu0 0.0
    %766 = vmatprep.subr.mxu0 0.0
    %767 = vmatpush1.msra.mxu0 0.0
    %768 = vmatprep.subr.mxu0 0.0
    %769 = vmatpush1.msra.mxu0 0.0
    %770 = vmatprep.subr.mxu0 0.0
    %771 = vmatpush1.msra.mxu0 0.0
    %772 = vmatprep.subr.mxu0 0.0
    %773 = vmatpush1.msra.mxu0 0.0
    %774 = vmatprep.subr.mxu0 0.0
    %775 = vmatpush1.msra.mxu0 0.0
    %776 = vmatprep.subr.mxu0 0.0
    %777 = vmatpush1.msra.mxu0 0.0
    %778 = vmatprep.subr.mxu0 0.0
    %779 = vmatpush1.msra.mxu0 0.0
    %780 = vmatprep.subr.mxu0 %v103
    %781 = vmatpush1.msra.mxu0 %v102
    %782 = vmatprep.subr.mxu0 %v95
    %783 = vmatpush1.msra.mxu0 %v94
    %784 = vmatprep.subr.mxu0 %v87
    %785 = vmatpush1.msra.mxu0 %v86
    %786 = vmatprep.subr.mxu0 %v79
    %787 = vmatpush1.msra.mxu0 %v78
    %788 = vmatprep.subr.mxu0 0.0
    %789 = vmatpush2.msra.mxu0 0.0
    %790 = vmatprep.subr.mxu0 0.0
    %791 = vmatpush2.msra.mxu0 0.0
    %792 = vmatprep.subr.mxu0 0.0
    %793 = vmatpush2.msra.mxu0 0.0
    %794 = vmatprep.subr.mxu0 0.0
    %795 = vmatpush2.msra.mxu0 0.0
    %796 = vmatprep.subr.mxu0 0.0
    %797 = vmatpush2.msra.mxu0 0.0
    %798 = vmatprep.subr.mxu0 0.0
    %799 = vmatpush2.msra.mxu0 0.0
    %800 = vmatprep.subr.mxu0 0.0
    %801 = vmatpush2.msra.mxu0 0.0
    %802 = vmatprep.subr.mxu0 0.0
    %803 = vmatpush2.msra.mxu0 0.0
    %804 = vmatprep.subr.mxu0 0.0
    %805 = vmatpush2.msra.mxu0 0.0
    %806 = vmatprep.subr.mxu0 0.0
    %807 = vmatpush2.msra.mxu0 0.0
    %808 = vmatprep.subr.mxu0 0.0
    %809 = vmatpush2.msra.mxu0 0.0
    %810 = vmatprep.subr.mxu0 0.0
    %811 = vmatpush2.msra.mxu0 0.0
    %812 = vmatprep.subr.mxu0 0.0
    %813 = vmatpush2.msra.mxu0 0.0
    %814 = vmatprep.subr.mxu0 0.0
    %815 = vmatpush2.msra.mxu0 0.0
    %816 = vmatprep.subr.mxu0 0.0
    %817 = vmatpush2.msra.mxu0 0.0
    %818 = vmatprep.subr.mxu0 0.0
    %819 = vmatpush2.msra.mxu0 0.0
    %820 = vmatprep.mubr.f32.mxu0 0.0
    %821 = vmatmul.mubr.f32.gmra.mxu0 %v745
    %v822 = vpop.f32.mrf.mxu0
    %v823 = vadd.f32 0.0, %v822
    %v824 = vpop.f32.mrf.mxu0
    %v825 = vadd.f32 0.0, %v824
    %826 = vmatprep.mubr.f32.mxu0 0.0
    %827 = vmatmul.mubr.f32.gmra.mxu0 %v748
    %v828 = vpop.f32.mrf.mxu0
    %v829 = vadd.f32 0.0, %v828
    %v830 = vpop.f32.mrf.mxu0
    %v831 = vadd.f32 0.0, %v830
    %832 = vmatprep.mubr.f32.mxu0 0.0
    %833 = vmatmul.mubr.f32.gmra.mxu0 %v751
    %v834 = vpop.f32.mrf.mxu0
    %v835 = vadd.f32 0.0, %v834
    %v836 = vpop.f32.mrf.mxu0
    %v837 = vadd.f32 0.0, %v836
    %838 = vmatprep.mubr.f32.mxu0 0.0
    %839 = vmatmul.mubr.f32.gmra.mxu0 %v754
    %v840 = vpop.f32.mrf.mxu0
    %v841 = vadd.f32 0.0, %v840
    %v842 = vpop.f32.mrf.mxu0
    %v843 = vadd.f32 0.0, %v842
    %844 = vdwg.mxu0
    %845 = vmatprep.subr.mxu0 0.0
    %846 = vmatpush1.msra.mxu0 0.0
    %847 = vmatprep.subr.mxu0 0.0
    %848 = vmatpush1.msra.mxu0 0.0
    %849 = vmatprep.subr.mxu0 0.0
    %850 = vmatpush1.msra.mxu0 0.0
    %851 = vmatprep.subr.mxu0 0.0
    %852 = vmatpush1.msra.mxu0 0.0
    %853 = vmatprep.subr.mxu0 0.0
    %854 = vmatpush1.msra.mxu0 0.0
    %855 = vmatprep.subr.mxu0 0.0
    %856 = vmatpush1.msra.mxu0 0.0
    %857 = vmatprep.subr.mxu0 0.0
    %858 = vmatpush1.msra.mxu0 0.0
    %859 = vmatprep.subr.mxu0 0.0
    %860 = vmatpush1.msra.mxu0 0.0
    %861 = vmatprep.subr.mxu0 0.0
    %862 = vmatpush1.msra.mxu0 0.0
    %863 = vmatprep.subr.mxu0 0.0
    %864 = vmatpush1.msra.mxu0 0.0
    %865 = vmatprep.subr.mxu0 0.0
    %866 = vmatpush1.msra.mxu0 0.0
    %867 = vmatprep.subr.mxu0 0.0
    %868 = vmatpush1.msra.mxu0 0.0
    %869 = vmatprep.subr.mxu0 %v105
    %870 = vmatpush1.msra.mxu0 %v104
    %871 = vmatprep.subr.mxu0 %v97
    %872 = vmatpush1.msra.mxu0 %v96
    %873 = vmatprep.subr.mxu0 %v89
    %874 = vmatpush1.msra.mxu0 %v88
    %875 = vmatprep.subr.mxu0 %v81
    %876 = vmatpush1.msra.mxu0 %v80
    %877 = vmatprep.subr.mxu0 0.0
    %878 = vmatpush2.msra.mxu0 0.0
    %879 = vmatprep.subr.mxu0 0.0
    %880 = vmatpush2.msra.mxu0 0.0
    %881 = vmatprep.subr.mxu0 0.0
    %882 = vmatpush2.msra.mxu0 0.0
    %883 = vmatprep.subr.mxu0 0.0
    %884 = vmatpush2.msra.mxu0 0.0
    %885 = vmatprep.subr.mxu0 0.0
    %886 = vmatpush2.msra.mxu0 0.0
    %887 = vmatprep.subr.mxu0 0.0
    %888 = vmatpush2.msra.mxu0 0.0
    %889 = vmatprep.subr.mxu0 0.0
    %890 = vmatpush2.msra.mxu0 0.0
    %891 = vmatprep.subr.mxu0 0.0
    %892 = vmatpush2.msra.mxu0 0.0
    %893 = vmatprep.subr.mxu0 0.0
    %894 = vmatpush2.msra.mxu0 0.0
    %895 = vmatprep.subr.mxu0 0.0
    %896 = vmatpush2.msra.mxu0 0.0
    %897 = vmatprep.subr.mxu0 0.0
    %898 = vmatpush2.msra.mxu0 0.0
    %899 = vmatprep.subr.mxu0 0.0
    %900 = vmatpush2.msra.mxu0 0.0
    %901 = vmatprep.subr.mxu0 0.0
    %902 = vmatpush2.msra.mxu0 0.0
    %903 = vmatprep.subr.mxu0 0.0
    %904 = vmatpush2.msra.mxu0 0.0
    %905 = vmatprep.subr.mxu0 0.0
    %906 = vmatpush2.msra.mxu0 0.0
    %907 = vmatprep.subr.mxu0 0.0
    %908 = vmatpush2.msra.mxu0 0.0
    %909 = vmatprep.mubr.f32.mxu0 0.0
    %910 = vmatmul.mubr.f32.gmra.mxu0 %v745
    %v911 = vpop.f32.mrf.mxu0
    %v912 = vadd.f32 0.0, %v911
    %v913 = vpop.f32.mrf.mxu0
    %v914 = vadd.f32 0.0, %v913
    %915 = vmatprep.mubr.f32.mxu0 0.0
    %916 = vmatmul.mubr.f32.gmra.mxu0 %v748
    %v917 = vpop.f32.mrf.mxu0
    %v918 = vadd.f32 0.0, %v917
    %v919 = vpop.f32.mrf.mxu0
    %v920 = vadd.f32 0.0, %v919
    %921 = vmatprep.mubr.f32.mxu0 0.0
    %922 = vmatmul.mubr.f32.gmra.mxu0 %v751
    %v923 = vpop.f32.mrf.mxu0
    %v924 = vadd.f32 0.0, %v923
    %v925 = vpop.f32.mrf.mxu0
    %v926 = vadd.f32 0.0, %v925
    %927 = vmatprep.mubr.f32.mxu0 0.0
    %928 = vmatmul.mubr.f32.gmra.mxu0 %v754
    %v929 = vpop.f32.mrf.mxu0
    %v930 = vadd.f32 0.0, %v929
    %v931 = vpop.f32.mrf.mxu0
    %v932 = vadd.f32 0.0, %v931
    %933 = vdwg.mxu0
    %934 = vmatprep.subr.mxu0 0.0
    %935 = vmatpush1.msra.mxu0 0.0
    %936 = vmatprep.subr.mxu0 0.0
    %937 = vmatpush1.msra.mxu0 0.0
    %938 = vmatprep.subr.mxu0 0.0
    %939 = vmatpush1.msra.mxu0 0.0
    %940 = vmatprep.subr.mxu0 0.0
    %941 = vmatpush1.msra.mxu0 0.0
    %942 = vmatprep.subr.mxu0 0.0
    %943 = vmatpush1.msra.mxu0 0.0
    %944 = vmatprep.subr.mxu0 0.0
    %945 = vmatpush1.msra.mxu0 0.0
    %946 = vmatprep.subr.mxu0 0.0
    %947 = vmatpush1.msra.mxu0 0.0
    %948 = vmatprep.subr.mxu0 0.0
    %949 = vmatpush1.msra.mxu0 0.0
    %950 = vmatprep.subr.mxu0 0.0
    %951 = vmatpush1.msra.mxu0 0.0
    %952 = vmatprep.subr.mxu0 0.0
    %953 = vmatpush1.msra.mxu0 0.0
    %954 = vmatprep.subr.mxu0 0.0
    %955 = vmatpush1.msra.mxu0 0.0
    %956 = vmatprep.subr.mxu0 0.0
    %957 = vmatpush1.msra.mxu0 0.0
    %958 = vmatprep.subr.mxu0 %v107
    %959 = vmatpush1.msra.mxu0 %v106
    %960 = vmatprep.subr.mxu0 %v99
    %961 = vmatpush1.msra.mxu0 %v98
    %962 = vmatprep.subr.mxu0 %v91
    %963 = vmatpush1.msra.mxu0 %v90
    %964 = vmatprep.subr.mxu0 %v83
    %965 = vmatpush1.msra.mxu0 %v82
    %966 = vmatprep.subr.mxu0 0.0
    %967 = vmatpush2.msra.mxu0 0.0
    %968 = vmatprep.subr.mxu0 0.0
    %969 = vmatpush2.msra.mxu0 0.0
    %970 = vmatprep.subr.mxu0 0.0
    %971 = vmatpush2.msra.mxu0 0.0
    %972 = vmatprep.subr.mxu0 0.0
    %973 = vmatpush2.msra.mxu0 0.0
    %974 = vmatprep.subr.mxu0 0.0
    %975 = vmatpush2.msra.mxu0 0.0
    %976 = vmatprep.subr.mxu0 0.0
    %977 = vmatpush2.msra.mxu0 0.0
    %978 = vmatprep.subr.mxu0 0.0
    %979 = vmatpush2.msra.mxu0 0.0
    %980 = vmatprep.subr.mxu0 0.0
    %981 = vmatpush2.msra.mxu0 0.0
    %982 = vmatprep.subr.mxu0 0.0
    %983 = vmatpush2.msra.mxu0 0.0
    %984 = vmatprep.subr.mxu0 0.0
    %985 = vmatpush2.msra.mxu0 0.0
    %986 = vmatprep.subr.mxu0 0.0
    %987 = vmatpush2.msra.mxu0 0.0
    %988 = vmatprep.subr.mxu0 0.0
    %989 = vmatpush2.msra.mxu0 0.0
    %990 = vmatprep.subr.mxu0 0.0
    %991 = vmatpush2.msra.mxu0 0.0
    %992 = vmatprep.subr.mxu0 0.0
    %993 = vmatpush2.msra.mxu0 0.0
    %994 = vmatprep.subr.mxu0 0.0
    %995 = vmatpush2.msra.mxu0 0.0
    %996 = vmatprep.subr.mxu0 0.0
    %997 = vmatpush2.msra.mxu0 0.0
    %998 = vmatprep.mubr.f32.mxu0 0.0
    %999 = vmatmul.mubr.f32.gmra.mxu0 %v745
    %v1000 = vpop.f32.mrf.mxu0
    %v1001 = vadd.f32 0.0, %v1000
    %v1002 = vpop.f32.mrf.mxu0
    %v1003 = vadd.f32 0.0, %v1002
    %1004 = vmatprep.mubr.f32.mxu0 0.0
    %1005 = vmatmul.mubr.f32.gmra.mxu0 %v748
    %v1006 = vpop.f32.mrf.mxu0
    %v1007 = vadd.f32 0.0, %v1006
    %v1008 = vpop.f32.mrf.mxu0
    %v1009 = vadd.f32 0.0, %v1008
    %1010 = vmatprep.mubr.f32.mxu0 0.0
    %1011 = vmatmul.mubr.f32.gmra.mxu0 %v751
    %v1012 = vpop.f32.mrf.mxu0
    %v1013 = vadd.f32 0.0, %v1012
    %v1014 = vpop.f32.mrf.mxu0
    %v1015 = vadd.f32 0.0, %v1014
    %1016 = vmatprep.mubr.f32.mxu0 0.0
    %1017 = vmatmul.mubr.f32.gmra.mxu0 %v754
    %v1018 = vpop.f32.mrf.mxu0
    %v1019 = vadd.f32 0.0, %v1018
    %v1020 = vpop.f32.mrf.mxu0
    %v1021 = vadd.f32 0.0, %v1020
    %1022 = vdwg.mxu0
    %1023 = vmatprep.subr.mxu0 0.0
    %1024 = vmatpush1.msra.mxu0 0.0
    %1025 = vmatprep.subr.mxu0 0.0
    %1026 = vmatpush1.msra.mxu0 0.0
    %1027 = vmatprep.subr.mxu0 0.0
    %1028 = vmatpush1.msra.mxu0 0.0
    %1029 = vmatprep.subr.mxu0 0.0
    %1030 = vmatpush1.msra.mxu0 0.0
    %1031 = vmatprep.subr.mxu0 0.0
    %1032 = vmatpush1.msra.mxu0 0.0
    %1033 = vmatprep.subr.mxu0 0.0
    %1034 = vmatpush1.msra.mxu0 0.0
    %1035 = vmatprep.subr.mxu0 0.0
    %1036 = vmatpush1.msra.mxu0 0.0
    %1037 = vmatprep.subr.mxu0 0.0
    %1038 = vmatpush1.msra.mxu0 0.0
    %1039 = vmatprep.subr.mxu0 0.0
    %1040 = vmatpush1.msra.mxu0 0.0
    %1041 = vmatprep.subr.mxu0 0.0
    %1042 = vmatpush1.msra.mxu0 0.0
    %1043 = vmatprep.subr.mxu0 0.0
    %1044 = vmatpush1.msra.mxu0 0.0
    %1045 = vmatprep.subr.mxu0 0.0
    %1046 = vmatpush1.msra.mxu0 0.0
    %1047 = vmatprep.subr.mxu0 %v109
    %1048 = vmatpush1.msra.mxu0 %v108
    %1049 = vmatprep.subr.mxu0 %v101
    %1050 = vmatpush1.msra.mxu0 %v100
    %1051 = vmatprep.subr.mxu0 %v93
    %1052 = vmatpush1.msra.mxu0 %v92
    %1053 = vmatprep.subr.mxu0 %v85
    %1054 = vmatpush1.msra.mxu0 %v84
    %1055 = vmatprep.subr.mxu0 0.0
    %1056 = vmatpush2.msra.mxu0 0.0
    %1057 = vmatprep.subr.mxu0 0.0
    %1058 = vmatpush2.msra.mxu0 0.0
    %1059 = vmatprep.subr.mxu0 0.0
    %1060 = vmatpush2.msra.mxu0 0.0
    %1061 = vmatprep.subr.mxu0 0.0
    %1062 = vmatpush2.msra.mxu0 0.0
    %1063 = vmatprep.subr.mxu0 0.0
    %1064 = vmatpush2.msra.mxu0 0.0
    %1065 = vmatprep.subr.mxu0 0.0
    %1066 = vmatpush2.msra.mxu0 0.0
    %1067 = vmatprep.subr.mxu0 0.0
    %1068 = vmatpush2.msra.mxu0 0.0
    %1069 = vmatprep.subr.mxu0 0.0
    %1070 = vmatpush2.msra.mxu0 0.0
    %1071 = vmatprep.subr.mxu0 0.0
    %1072 = vmatpush2.msra.mxu0 0.0
    %1073 = vmatprep.subr.mxu0 0.0
    %1074 = vmatpush2.msra.mxu0 0.0
    %1075 = vmatprep.subr.mxu0 0.0
    %1076 = vmatpush2.msra.mxu0 0.0
    %1077 = vmatprep.subr.mxu0 0.0
    %1078 = vmatpush2.msra.mxu0 0.0
    %1079 = vmatprep.subr.mxu0 0.0
    %1080 = vmatpush2.msra.mxu0 0.0
    %1081 = vmatprep.subr.mxu0 0.0
    %1082 = vmatpush2.msra.mxu0 0.0
    %1083 = vmatprep.subr.mxu0 0.0
    %1084 = vmatpush2.msra.mxu0 0.0
    %1085 = vmatprep.subr.mxu0 0.0
    %1086 = vmatpush2.msra.mxu0 0.0
    %1087 = vmatprep.mubr.f32.mxu0 0.0
    %1088 = vmatmul.mubr.f32.gmra.mxu0 %v745
    %v1089 = vpop.f32.mrf.mxu0
    %v1090 = vadd.f32 0.0, %v1089
    %v1091 = vpop.f32.mrf.mxu0
    %v1092 = vadd.f32 0.0, %v1091
    %1093 = vmatprep.mubr.f32.mxu0 0.0
    %1094 = vmatmul.mubr.f32.gmra.mxu0 %v748
    %v1095 = vpop.f32.mrf.mxu0
    %v1096 = vadd.f32 0.0, %v1095
    %v1097 = vpop.f32.mrf.mxu0
    %v1098 = vadd.f32 0.0, %v1097
    %1099 = vmatprep.mubr.f32.mxu0 0.0
    %1100 = vmatmul.mubr.f32.gmra.mxu0 %v751
    %v1101 = vpop.f32.mrf.mxu0
    %v1102 = vadd.f32 0.0, %v1101
    %v1103 = vpop.f32.mrf.mxu0
    %v1104 = vadd.f32 0.0, %v1103
    %1105 = vmatprep.mubr.f32.mxu0 0.0
    %1106 = vmatmul.mubr.f32.gmra.mxu0 %v754
    %v1107 = vpop.f32.mrf.mxu0
    %v1108 = vadd.f32 0.0, %v1107
    %v1109 = vpop.f32.mrf.mxu0
    %v1110 = vadd.f32 0.0, %v1109
    %1111 = vdwg.mxu0
    %v1112 = vmul.f32 %v823, %v361
    %v1113 = vmul.f32 %v825, %v363
    %v1114 = vmul.f32 %v912, %v450
    %v1115 = vmul.f32 %v914, %v452
    %v1116 = vmul.f32 %v1001, %v539
    %v1117 = vmul.f32 %v1003, %v541
    %v1118 = vmul.f32 %v1090, %v628
    %v1119 = vmul.f32 %v1092, %v630
    %v1120 = vmul.f32 %v829, %v367
    %v1121 = vmul.f32 %v831, %v369
    %v1122 = vmul.f32 %v918, %v456
    %v1123 = vmul.f32 %v920, %v458
    %v1124 = vmul.f32 %v1007, %v545
    %v1125 = vmul.f32 %v1009, %v547
    %v1126 = vmul.f32 %v1096, %v634
    %v1127 = vmul.f32 %v1098, %v636
    %v1128 = vmul.f32 %v835, %v373
    %v1129 = vmul.f32 %v837, %v375
    %v1130 = vmul.f32 %v924, %v462
    %v1131 = vmul.f32 %v926, %v464
    %v1132 = vmul.f32 %v1013, %v551
    %v1133 = vmul.f32 %v1015, %v553
    %v1134 = vmul.f32 %v1102, %v640
    %v1135 = vmul.f32 %v1104, %v642
    %v1136 = vmul.f32 %v841, %v379
    %v1137 = vmul.f32 %v843, %v381
    %v1138 = vmul.f32 %v930, %v468
    %v1139 = vmul.f32 %v932, %v470
    %v1140 = vmul.f32 %v1019, %v557
    %v1141 = vmul.f32 %v1021, %v559
    %v1142 = vmul.f32 %v1108, %v646
    %v1143 = vmul.f32 %v1110, %v648
    %v1144 = vadd.f32 %v1112, %v1113
    %v1145 = vadd.f32 %v1120, %v1121
    %v1146 = vadd.f32 %v1128, %v1129
    %v1147 = vadd.f32 %v1136, %v1137
    %v1148 = vadd.f32 %v1144, %v1114
    %v1149 = vadd.f32 %v1145, %v1122
    %v1150 = vadd.f32 %v1146, %v1130
    %v1151 = vadd.f32 %v1147, %v1138
    %v1152 = vadd.f32 %v1148, %v1115
    %v1153 = vadd.f32 %v1149, %v1123
    %v1154 = vadd.f32 %v1150, %v1131
    %v1155 = vadd.f32 %v1151, %v1139
    %v1156 = vadd.f32 %v1152, %v1116
    %v1157 = vadd.f32 %v1153, %v1124
    %v1158 = vadd.f32 %v1154, %v1132
    %v1159 = vadd.f32 %v1155, %v1140
    %v1160 = vadd.f32 %v1156, %v1117
    %v1161 = vadd.f32 %v1157, %v1125
    %v1162 = vadd.f32 %v1158, %v1133
    %v1163 = vadd.f32 %v1159, %v1141
    %v1164 = vadd.f32 %v1160, %v1118
    %v1165 = vadd.f32 %v1161, %v1126
    %v1166 = vadd.f32 %v1162, %v1134
    %v1167 = vadd.f32 %v1163, %v1142
    %v1168 = vadd.f32 %v1164, %v1119
    %v1169 = vadd.f32 %v1165, %v1127
    %v1170 = vadd.f32 %v1166, %v1135
    %v1171 = vadd.f32 %v1167, %v1143
    %1172 = vrot.lane.b32.xlu0 %v1168, 32
    %v1173 = vpop.permute.xlu0 %1172
    %1174 = vrot.lane.b32.xlu0 %v1169, 32
    %v1175 = vpop.permute.xlu0 %1174
    %1176 = vrot.lane.b32.xlu0 %v1170, 32
    %v1177 = vpop.permute.xlu0 %1176
    %1178 = vrot.lane.b32.xlu0 %v1171, 32
    %v1179 = vpop.permute.xlu0 %1178
    %v1180 = vadd.f32 %v1168, %v1173
    %v1181 = vadd.f32 %v1169, %v1175
    %v1182 = vadd.f32 %v1170, %v1177
    %v1183 = vadd.f32 %v1171, %v1179
    %1184 = vrot.lane.b32.xlu0 %v1180, 64
    %v1185 = vpop.permute.xlu0 %1184
    %1186 = vrot.lane.b32.xlu0 %v1181, 64
    %v1187 = vpop.permute.xlu0 %1186
    %1188 = vrot.lane.b32.xlu0 %v1182, 64
    %v1189 = vpop.permute.xlu0 %1188
    %1190 = vrot.lane.b32.xlu0 %v1183, 64
    %v1191 = vpop.permute.xlu0 %1190
    %v1192 = vadd.f32 %v1180, %v1185
    %v1193 = vadd.f32 %v1181, %v1187
    %v1194 = vadd.f32 %v1182, %v1189
    %v1195 = vadd.f32 %v1183, %v1191
    %v1196 = vlaneseq
    %v1197 = vshrl.u32 %v1196, 7
    %v1198 = vsub.s32 0, %v1197
    %v1199 = vrot.slane %v43, %v1198
    %v1201 = vsel %vm281, %v212, 0
    %v1204 = vsel %vm281, %v213, 0
    %1206 = vmatprep.subr.mxu0 0.0
    %1207 = vmatpush1.msra.mxu0 0.0
    %1208 = vmatprep.subr.mxu0 0.0
    %1209 = vmatpush1.msra.mxu0 0.0
    %1210 = vmatprep.subr.mxu0 0.0
    %1211 = vmatpush1.msra.mxu0 0.0
    %1212 = vmatprep.subr.mxu0 0.0
    %1213 = vmatpush1.msra.mxu0 0.0
    %1214 = vmatprep.subr.mxu0 0.0
    %1215 = vmatpush1.msra.mxu0 0.0
    %1216 = vmatprep.subr.mxu0 0.0
    %1217 = vmatpush1.msra.mxu0 0.0
    %1218 = vmatprep.subr.mxu0 0.0
    %1219 = vmatpush1.msra.mxu0 0.0
    %1220 = vmatprep.subr.mxu0 0.0
    %1221 = vmatpush1.msra.mxu0 0.0
    %1222 = vmatprep.subr.mxu0 0.0
    %1223 = vmatpush1.msra.mxu0 0.0
    %1224 = vmatprep.subr.mxu0 0.0
    %1225 = vmatpush1.msra.mxu0 0.0
    %1226 = vmatprep.subr.mxu0 0.0
    %1227 = vmatpush1.msra.mxu0 0.0
    %1228 = vmatprep.subr.mxu0 0.0
    %1229 = vmatpush1.msra.mxu0 0.0
    %1230 = vmatprep.subr.mxu0 0.0
    %1231 = vmatpush1.msra.mxu0 %v41
    %1232 = vmatprep.subr.mxu0 0.0
    %1233 = vmatpush1.msra.mxu0 %v39
    %1234 = vmatprep.subr.mxu0 0.0
    %1235 = vmatpush1.msra.mxu0 %v37
    %1236 = vmatprep.subr.mxu0 0.0
    %1237 = vmatpush1.msra.mxu0 %v35
    %1238 = vmatprep.subr.mxu0 0.0
    %1239 = vmatpush2.msra.mxu0 0.0
    %1240 = vmatprep.subr.mxu0 0.0
    %1241 = vmatpush2.msra.mxu0 0.0
    %1242 = vmatprep.subr.mxu0 0.0
    %1243 = vmatpush2.msra.mxu0 0.0
    %1244 = vmatprep.subr.mxu0 0.0
    %1245 = vmatpush2.msra.mxu0 0.0
    %1246 = vmatprep.subr.mxu0 0.0
    %1247 = vmatpush2.msra.mxu0 0.0
    %1248 = vmatprep.subr.mxu0 0.0
    %1249 = vmatpush2.msra.mxu0 0.0
    %1250 = vmatprep.subr.mxu0 0.0
    %1251 = vmatpush2.msra.mxu0 0.0
    %1252 = vmatprep.subr.mxu0 0.0
    %1253 = vmatpush2.msra.mxu0 0.0
    %1254 = vmatprep.subr.mxu0 0.0
    %1255 = vmatpush2.msra.mxu0 0.0
    %1256 = vmatprep.subr.mxu0 0.0
    %1257 = vmatpush2.msra.mxu0 0.0
    %1258 = vmatprep.subr.mxu0 0.0
    %1259 = vmatpush2.msra.mxu0 0.0
    %1260 = vmatprep.subr.mxu0 0.0
    %1261 = vmatpush2.msra.mxu0 0.0
    %1262 = vmatprep.subr.mxu0 0.0
    %1263 = vmatpush2.msra.mxu0 0.0
    %1264 = vmatprep.subr.mxu0 0.0
    %1265 = vmatpush2.msra.mxu0 0.0
    %1266 = vmatprep.subr.mxu0 0.0
    %1267 = vmatpush2.msra.mxu0 0.0
    %1268 = vmatprep.subr.mxu0 0.0
    %1269 = vmatpush2.msra.mxu0 0.0
    %1270 = vmatprep.mubr.f32.mxu0 0.0
    %1271 = vmatmul.mubr.f32.gmra.mxu0 %v1201
    %v1272 = vpop.f32.mrf.mxu0
    %v1273 = vadd.f32 %v1199, %v1272
    %v1274 = vpop.f32.mrf.mxu0
    %1275 = vmatprep.mubr.f32.mxu0 0.0
    %1276 = vmatmul.mubr.f32.gmra.mxu0 %v1204
    %v1277 = vpop.f32.mrf.mxu0
    %v1278 = vadd.f32 %v1199, %v1277
    %v1279 = vpop.f32.mrf.mxu0
    %1280 = vdwg.mxu0
    %v1281 = vsel %vm281, %v29, 0
    %v1283 = vsel %vm281, %v30, 0
    %1285 = vmatprep.subr.mxu0 0.0
    %1286 = vmatpush1.msra.mxu0 0.0
    %1287 = vmatprep.subr.mxu0 0.0
    %1288 = vmatpush1.msra.mxu0 0.0
    %1289 = vmatprep.subr.mxu0 0.0
    %1290 = vmatpush1.msra.mxu0 0.0
    %1291 = vmatprep.subr.mxu0 0.0
    %1292 = vmatpush1.msra.mxu0 0.0
    %1293 = vmatprep.subr.mxu0 0.0
    %1294 = vmatpush1.msra.mxu0 0.0
    %1295 = vmatprep.subr.mxu0 0.0
    %1296 = vmatpush1.msra.mxu0 0.0
    %1297 = vmatprep.subr.mxu0 0.0
    %1298 = vmatpush1.msra.mxu0 0.0
    %1299 = vmatprep.subr.mxu0 0.0
    %1300 = vmatpush1.msra.mxu0 0.0
    %1301 = vmatprep.subr.mxu0 0.0
    %1302 = vmatpush1.msra.mxu0 0.0
    %1303 = vmatprep.subr.mxu0 0.0
    %1304 = vmatpush1.msra.mxu0 0.0
    %1305 = vmatprep.subr.mxu0 0.0
    %1306 = vmatpush1.msra.mxu0 0.0
    %1307 = vmatprep.subr.mxu0 0.0
    %1308 = vmatpush1.msra.mxu0 0.0
    %1309 = vmatprep.subr.mxu0 0.0
    %1310 = vmatpush1.msra.mxu0 %v1195
    %1311 = vmatprep.subr.mxu0 0.0
    %1312 = vmatpush1.msra.mxu0 %v1194
    %1313 = vmatprep.subr.mxu0 0.0
    %1314 = vmatpush1.msra.mxu0 %v1193
    %1315 = vmatprep.subr.mxu0 0.0
    %1316 = vmatpush1.msra.mxu0 %v1192
    %1317 = vmatprep.subr.mxu0 0.0
    %1318 = vmatpush2.msra.mxu0 0.0
    %1319 = vmatprep.subr.mxu0 0.0
    %1320 = vmatpush2.msra.mxu0 0.0
    %1321 = vmatprep.subr.mxu0 0.0
    %1322 = vmatpush2.msra.mxu0 0.0
    %1323 = vmatprep.subr.mxu0 0.0
    %1324 = vmatpush2.msra.mxu0 0.0
    %1325 = vmatprep.subr.mxu0 0.0
    %1326 = vmatpush2.msra.mxu0 0.0
    %1327 = vmatprep.subr.mxu0 0.0
    %1328 = vmatpush2.msra.mxu0 0.0
    %1329 = vmatprep.subr.mxu0 0.0
    %1330 = vmatpush2.msra.mxu0 0.0
    %1331 = vmatprep.subr.mxu0 0.0
    %1332 = vmatpush2.msra.mxu0 0.0
    %1333 = vmatprep.subr.mxu0 0.0
    %1334 = vmatpush2.msra.mxu0 0.0
    %1335 = vmatprep.subr.mxu0 0.0
    %1336 = vmatpush2.msra.mxu0 0.0
    %1337 = vmatprep.subr.mxu0 0.0
    %1338 = vmatpush2.msra.mxu0 0.0
    %1339 = vmatprep.subr.mxu0 0.0
    %1340 = vmatpush2.msra.mxu0 0.0
    %1341 = vmatprep.subr.mxu0 0.0
    %1342 = vmatpush2.msra.mxu0 0.0
    %1343 = vmatprep.subr.mxu0 0.0
    %1344 = vmatpush2.msra.mxu0 0.0
    %1345 = vmatprep.subr.mxu0 0.0
    %1346 = vmatpush2.msra.mxu0 0.0
    %1347 = vmatprep.subr.mxu0 0.0
    %1348 = vmatpush2.msra.mxu0 0.0
    %1349 = vmatprep.mubr.f32.mxu0 0.0
    %1350 = vmatmul.mubr.f32.gmra.mxu0 %v1281
    %v1351 = vpop.f32.mrf.mxu0
    %v1352 = vadd.f32 %v1273, %v1351
    %v1353 = vpop.f32.mrf.mxu0
    %1354 = vmatprep.mubr.f32.mxu0 0.0
    %1355 = vmatmul.mubr.f32.gmra.mxu0 %v1283
    %v1356 = vpop.f32.mrf.mxu0
    %v1357 = vadd.f32 %v1278, %v1356
    %v1358 = vpop.f32.mrf.mxu0
    %1359 = vdwg.mxu0
    %v1360 = vlaneseq
    %v1361 = vshrl.u32 %v1360, 7
    %v1362 = vsub.s32 0, %v1361
    %v1363 = vrot.slane %v44, %v1362
    %v1365 = vsel %vm281, %v1352, 0
    %v1368 = vsel %vm281, %v1357, 0
    %1370 = vmatprep.subr.mxu0 0.0
    %1371 = vmatpush1.msra.mxu0 0.0
    %1372 = vmatprep.subr.mxu0 0.0
    %1373 = vmatpush1.msra.mxu0 0.0
    %1374 = vmatprep.subr.mxu0 0.0
    %1375 = vmatpush1.msra.mxu0 0.0
    %1376 = vmatprep.subr.mxu0 0.0
    %1377 = vmatpush1.msra.mxu0 0.0
    %1378 = vmatprep.subr.mxu0 0.0
    %1379 = vmatpush1.msra.mxu0 0.0
    %1380 = vmatprep.subr.mxu0 0.0
    %1381 = vmatpush1.msra.mxu0 0.0
    %1382 = vmatprep.subr.mxu0 0.0
    %1383 = vmatpush1.msra.mxu0 0.0
    %1384 = vmatprep.subr.mxu0 0.0
    %1385 = vmatpush1.msra.mxu0 0.0
    %1386 = vmatprep.subr.mxu0 0.0
    %1387 = vmatpush1.msra.mxu0 0.0
    %1388 = vmatprep.subr.mxu0 0.0
    %1389 = vmatpush1.msra.mxu0 0.0
    %1390 = vmatprep.subr.mxu0 0.0
    %1391 = vmatpush1.msra.mxu0 0.0
    %1392 = vmatprep.subr.mxu0 0.0
    %1393 = vmatpush1.msra.mxu0 0.0
    %1394 = vmatprep.subr.mxu0 0.0
    %1395 = vmatpush1.msra.mxu0 %v42
    %1396 = vmatprep.subr.mxu0 0.0
    %1397 = vmatpush1.msra.mxu0 %v40
    %1398 = vmatprep.subr.mxu0 0.0
    %1399 = vmatpush1.msra.mxu0 %v38
    %1400 = vmatprep.subr.mxu0 0.0
    %1401 = vmatpush1.msra.mxu0 %v36
    %1402 = vmatprep.subr.mxu0 0.0
    %1403 = vmatpush2.msra.mxu0 0.0
    %1404 = vmatprep.subr.mxu0 0.0
    %1405 = vmatpush2.msra.mxu0 0.0
    %1406 = vmatprep.subr.mxu0 0.0
    %1407 = vmatpush2.msra.mxu0 0.0
    %1408 = vmatprep.subr.mxu0 0.0
    %1409 = vmatpush2.msra.mxu0 0.0
    %1410 = vmatprep.subr.mxu0 0.0
    %1411 = vmatpush2.msra.mxu0 0.0
    %1412 = vmatprep.subr.mxu0 0.0
    %1413 = vmatpush2.msra.mxu0 0.0
    %1414 = vmatprep.subr.mxu0 0.0
    %1415 = vmatpush2.msra.mxu0 0.0
    %1416 = vmatprep.subr.mxu0 0.0
    %1417 = vmatpush2.msra.mxu0 0.0
    %1418 = vmatprep.subr.mxu0 0.0
    %1419 = vmatpush2.msra.mxu0 0.0
    %1420 = vmatprep.subr.mxu0 0.0
    %1421 = vmatpush2.msra.mxu0 0.0
    %1422 = vmatprep.subr.mxu0 0.0
    %1423 = vmatpush2.msra.mxu0 0.0
    %1424 = vmatprep.subr.mxu0 0.0
    %1425 = vmatpush2.msra.mxu0 0.0
    %1426 = vmatprep.subr.mxu0 0.0
    %1427 = vmatpush2.msra.mxu0 0.0
    %1428 = vmatprep.subr.mxu0 0.0
    %1429 = vmatpush2.msra.mxu0 0.0
    %1430 = vmatprep.subr.mxu0 0.0
    %1431 = vmatpush2.msra.mxu0 0.0
    %1432 = vmatprep.subr.mxu0 0.0
    %1433 = vmatpush2.msra.mxu0 0.0
    %1434 = vmatprep.mubr.f32.mxu0 0.0
    %1435 = vmatmul.mubr.f32.gmra.mxu0 %v1365
    %v1436 = vpop.f32.mrf.mxu0
    %v1437 = vadd.f32 %v1363, %v1436
    %v1438 = vpop.f32.mrf.mxu0
    %1439 = vmatprep.mubr.f32.mxu0 0.0
    %1440 = vmatmul.mubr.f32.gmra.mxu0 %v1368
    %v1441 = vpop.f32.mrf.mxu0
    %v1442 = vadd.f32 %v1363, %v1441
    %v1443 = vpop.f32.mrf.mxu0
    %1444 = vdwg.mxu0
    %1447 = vrot.lane.b32.xlu0 %v1273, 96
    %v1448 = vpop.permute.xlu0 %1447
    %1449 = vrot.lane.b32.xlu0 %v1278, 96
    %v1450 = vpop.permute.xlu0 %1449
    %v1453 = vadd.f32 %v1437, %v1448
    %v1454 = vadd.f32 %v1442, %v1450
    %v1455 = vxor.u32 %v1453, 2147483648
    %v1456 = vxor.u32 %v1454, 2147483648
    %v1457 = vmul.f32 %v1455, 1.442695
    %v1458 = vpow.pop %v1457
    %v1459 = vmul.f32 %v1456, 1.442695
    %v1460 = vpow.pop %v1459
    %v1461 = vadd.f32 %v1458, 1.0
    %v1462 = vadd.f32 %v1460, 1.0
    %v1463 = vrcp.pop %v1461
    %v1464 = vmul.f32 1.0, %v1463
    %v1465 = vrcp.pop %v1462
    %v1466 = vmul.f32 1.0, %v1465
    %1467 = vrot.lane.b32.xlu0 %v1273, 32
    %v1468 = vpop.permute.xlu0 %1467
    %1469 = vrot.lane.b32.xlu0 %v1278, 32
    %v1470 = vpop.permute.xlu0 %1469
    %v1473 = vmul.f32 %v1464, %v1468
    %v1474 = vmul.f32 %v1466, %v1470
    %1477 = vrot.lane.b32.xlu0 %v1473, 64
    %v1478 = vpop.permute.xlu0 %1477
    %1479 = vrot.lane.b32.xlu0 %v1474, 64
    %v1480 = vpop.permute.xlu0 %1479
    %v1483 = vadd.f32 %v1437, %v1478
    %v1484 = vadd.f32 %v1442, %v1480
    %v1485 = vtanh.pop %v1483
    %v1486 = vtanh.pop %v1484
    %v1487 = vsub.f32 1.0, %v1464
    %v1488 = vsub.f32 1.0, %v1466
    %1491 = vrot.lane.b32.xlu0 %v1485, 96
    %v1492 = vpop.permute.xlu0 %1491
    %1493 = vrot.lane.b32.xlu0 %v1486, 96
    %v1494 = vpop.permute.xlu0 %1493
    %v1497 = vmul.f32 %v1487, %v1492
    %v1498 = vmul.f32 %v1488, %v1494
    %1499 = vrot.lane.b32.xlu0 %v212, 32
    %v1500 = vpop.permute.xlu0 %1499
    %1501 = vrot.lane.b32.xlu0 %v213, 32
    %v1502 = vpop.permute.xlu0 %1501
    %v1505 = vmul.f32 %v1464, %v1500
    %v1506 = vmul.f32 %v1466, %v1502
    %v1507 = vadd.f32 %v1497, %v1505
    %v1508 = vadd.f32 %v1498, %v1506
    %1511 = vrot.lane.b32.xlu0 %v1507, 96
    %v1512 = vpop.permute.xlu0 %1511
    %1513 = vrot.lane.b32.xlu0 %v1508, 96
    %v1514 = vpop.permute.xlu0 %1513
    %1519 = vrot.lane.b32.xlu0 %v1437, 32
    %v1520 = vpop.permute.xlu0 %1519
    %1521 = vrot.lane.b32.xlu0 %v1442, 32
    %v1522 = vpop.permute.xlu0 %1521
    %v1525 = vsel %vm281, %v1512, %v1520
    %v1526 = vsel %vm281, %v1514, %v1522
    %1527 = vst [vmem:[#allocation5] sm:$0xff] %v1525
    %1528 = vst [vmem:[#allocation5 + $0x8] sm:$0xff] %v1526
    // Predicated region
    $region18: #{message_passing_forward.1} parent=1 // pred_check
      _
    $region19: #{message_passing_forward.1} parent=1 // pred_check_branch
      %1530 = sbr.rel (0) target = $region21
    $region20: #{message_passing_forward.1} parent=1 // pred_region
      %s1532 = ssub.s32 256, 256
      %1533 = vsyncadd [#allocation4], %s1532
      %s1534 = sshll.u32 [#allocation5], 4
      %s1535 = int_to_ptr.vmem [resolvable:$true] %s1534
      %1540 = dma.vmem_to_hbm [thread:$0]  %s1535, 256, %s3, [#allocation4], 128, 128, 8
    $region21: #{message_passing_forward.1} parent=1 // pred_fallthru
      _
    // Predicated region
    $region22: #{message_passing_forward.1} parent=1 // pred_check
      _
    $region23: #{message_passing_forward.1} parent=1 // pred_check_branch
      %1542 = sbr.rel (0) target = $region25
    $region24: #{message_passing_forward.1} parent=1 // pred_region
      %1543 = dma.done [#allocation4], 256
    $region25: #{message_passing_forward.1} parent=1 // pred_fallthru
      _
    %1544 = vsyncpa [#allocation3], 1
    %1545 = vsyncpa [#allocation4], 1

</llo_original>
